<compile_context>
chip_gen: v5e
topology: v5e:2x2
jax: 0.10.0
libtpu: 0.0.40
codegen_flags: <defaults>
</compile_context>

<pallas_src>
import functools

import jax
import jax.numpy as jnp
from jax.experimental import pallas as pl
from jax.experimental.pallas import tpu as pltpu


# ----------------------------------------------------------------------------
# Fused kernel: all views + classify head, single program (no grid)
# ----------------------------------------------------------------------------
def _vmvae_classify_kernel(x_ref, eps_ref, mask_ref,
                           e1w, e1b, e2w, e2b, e3w, e3b, hw, hb,
                           d1w, d1b, d2w, d2b, d3w, d3b, d4w, d4b,
                           fcw, fcb,
                           recon_ref, small_ref, logits_ref,
                           *, num_views, lp):
    """Refs:
      x_ref    (V, B, d_pad)   zero-padded per-view inputs
      eps_ref  (V, B, lp)      zero-padded reparameterization noise
      mask_ref (V, B, 1)       missing_matrix transposed / expanded
      per-view weight stacks (V, in, out), biases (V, 1, out)
      heads: [mu | logvar | pi], each head starting at a multiple of lp lanes
      recon_ref  (V, B, d_pad)
      small_ref  (V, B, 4*lp)  layout: mu@0, logvar@lp, pi@2lp, z@3lp
      logits_ref (B, lp)
    """
    def dense(x, w, b, relu=True):
        y = jnp.dot(x, w, preferred_element_type=jnp.float32) + b
        return jnp.maximum(y, 0.0) if relu else y

    B = x_ref.shape[1]
    num = jnp.zeros((B, lp), jnp.float32)   # mask-weighted sum of mus
    den = jnp.zeros((B, 1), jnp.float32)    # number of observed views

    for v in range(num_views):              # static unroll; V is tiny
        x = x_ref[v]                                        # (B, d_pad)
        e1 = dense(x, e1w[v], e1b[v])
        e2 = dense(e1, e2w[v], e2b[v])
        e3 = dense(e2, e3w[v], e3b[v])
        # fused heads [mu | logvar | pi], each 128-lane aligned -> (B, 3*lp)
        heads = dense(e3, hw[v], hb[v], relu=False)
        mu = heads[:, 0 * lp:1 * lp]                        # vreg-aligned slice
        lv = heads[:, 1 * lp:2 * lp]                        # vreg-aligned slice
        # reparameterization (exp rides the EUP slot); padded lanes stay 0
        z = mu + jnp.exp(0.5 * lv) * eps_ref[v]
        # decoder
        d1 = dense(z, d1w[v], d1b[v])
        d2 = dense(d1, d2w[v], d2b[v])
        d3 = dense(d2, d3w[v], d3b[v])
        recon = dense(d3, d4w[v], d4b[v], relu=False)       # (B, d_pad)

        recon_ref[v] = recon.astype(recon_ref.dtype)        # full-lane store
        # lane-dense grouped small output: concat at 128-lane boundaries (free)
        small_ref[v] = jnp.concatenate([heads, z], axis=1).astype(small_ref.dtype)

        # incomplete_average_mus accumulation (fused classify)
        m = mask_ref[v]                                     # (B, 1)
        num = num + mu * m
        den = den + m

    feat = num / jnp.maximum(den, 1.0)                      # masked mean of mus
    logits = jnp.dot(feat, fcw[...], preferred_element_type=jnp.float32) + fcb[...]
    logits_ref[...] = logits.astype(logits_ref.dtype)       # full-lane store


# ----------------------------------------------------------------------------
# Parameter initialization (deterministic, torch.nn.Linear-style uniform)
# ----------------------------------------------------------------------------
def _dense_params(key, fan_in, fan_out):
    k_w, k_b = jax.random.split(key)
    lim = 1.0 / jnp.sqrt(jnp.float32(fan_in))
    w = jax.random.uniform(k_w, (fan_in, fan_out), jnp.float32, -lim, lim)
    b = jax.random.uniform(k_b, (fan_out,), jnp.float32, -lim, lim)
    return w, b


def init_vmvae_classify_params(key, num_views, input_dims, h1, h2, h3, latent_dim):
    params = {"views": []}
    for v in range(num_views):
        kv = jax.random.fold_in(key, v)
        ks = jax.random.split(kv, 10)
        d_in = input_dims[v]
        params["views"].append({
            "enc1": _dense_params(ks[0], d_in, h1),
            "enc2": _dense_params(ks[1], h1, h2),
            "enc3": _dense_params(ks[2], h2, h3),
            "mu": _dense_params(ks[3], h3, latent_dim),
            "logvar": _dense_params(ks[4], h3, latent_dim),
            "dec1": _dense_params(ks[5], latent_dim, h3),
            "dec2": _dense_params(ks[6], h3, h2),
            "dec3": _dense_params(ks[7], h2, h1),
            "dec4": _dense_params(ks[8], h1, d_in),
            "pi": _dense_params(ks[9], h3, 1),
        })
    # Reference module: fc = nn.Linear(latent_dim, latent_dim) (num_classes unused)
    params["fc"] = _dense_params(jax.random.fold_in(key, 1000), latent_dim, latent_dim)
    return params


# ----------------------------------------------------------------------------
# One-time weight packing (hoisted out of the per-call path)
# ----------------------------------------------------------------------------
def _pad2(w, rows, cols):
    return jnp.pad(w, ((0, rows - w.shape[0]), (0, cols - w.shape[1])))


def pack_vmvae_classify_params(params, d_pad, lp):
    """Stack per-view weights into (V, in, out) slabs.  enc1 in-dim / dec4 out-dim
    padded to d_pad; mu/logvar/pi heads concatenated with each head starting at a
    128-lane-aligned column; dec1 in-dim and fc padded to lp lanes."""
    views = params["views"]
    h3 = views[0]["enc3"][0].shape[1]
    h1 = views[0]["enc1"][0].shape[1]

    def stack_w(name):
        return jnp.stack([p[name][0] for p in views])

    def stack_b(name):
        return jnp.stack([p[name][1].reshape(1, -1) for p in views])

    enc1_w = jnp.stack([_pad2(p["enc1"][0], d_pad, h1) for p in views])
    enc1_b = stack_b("enc1")
    enc2_w, enc2_b = stack_w("enc2"), stack_b("enc2")
    enc3_w, enc3_b = stack_w("enc3"), stack_b("enc3")

    heads_w = jnp.stack([
        jnp.concatenate([_pad2(p["mu"][0], h3, lp),
                         _pad2(p["logvar"][0], h3, lp),
                         _pad2(p["pi"][0], h3, lp)], axis=1)
        for p in views])                                     # (V, h3, 3*lp)
    heads_b = jnp.stack([
        jnp.concatenate([jnp.pad(p["mu"][1], (0, lp - p["mu"][1].shape[0])),
                         jnp.pad(p["logvar"][1], (0, lp - p["logvar"][1].shape[0])),
                         jnp.pad(p["pi"][1], (0, lp - p["pi"][1].shape[0]))]
                        ).reshape(1, -1)
        for p in views])                                     # (V, 1, 3*lp)

    dec1_w = jnp.stack([_pad2(p["dec1"][0], lp, h3) for p in views])
    dec1_b = stack_b("dec1")
    dec2_w, dec2_b = stack_w("dec2"), stack_b("dec2")
    dec3_w, dec3_b = stack_w("dec3"), stack_b("dec3")
    dec4_w = jnp.stack([_pad2(p["dec4"][0], p["dec4"][0].shape[0], d_pad)
                        for p in views])
    dec4_b = jnp.stack([jnp.pad(p["dec4"][1], (0, d_pad - p["dec4"][1].shape[0])
                                ).reshape(1, -1)
                        for p in views])

    fc_w = _pad2(params["fc"][0], lp, lp)
    fc_b = jnp.pad(params["fc"][1], (0, lp - params["fc"][1].shape[0])).reshape(1, -1)

    return (enc1_w, enc1_b, enc2_w, enc2_b, enc3_w, enc3_b, heads_w, heads_b,
            dec1_w, dec1_b, dec2_w, dec2_b, dec3_w, dec3_b, dec4_w, dec4_b,
            fc_w, fc_b)


# ----------------------------------------------------------------------------
# Forward pass (ONE pallas_call; jitted; packing done once by the caller)
# ----------------------------------------------------------------------------
@functools.partial(jax.jit, static_argnames=("input_dims", "latent_dim", "d_pad", "lp"))
def vmvae_classify_forward(packed, batch_inputs, missing_matrix, eps_list, *,
                           input_dims, latent_dim, d_pad, lp):
    V = len(input_dims)
    B = batch_inputs[0].shape[0]
    L = latent_dim

    x_pad = jnp.stack([jnp.pad(x, ((0, 0), (0, d_pad - x.shape[1])))
                       for x in batch_inputs])                      # (V, B, d_pad)
    eps_pad = jnp.stack([jnp.pad(e, ((0, 0), (0, lp - L)))
                         for e in eps_list])                        # (V, B, lp)
    mask = missing_matrix.astype(jnp.float32).T[:, :, None]         # (V, B, 1)

    n_in = 3 + len(packed)
    kernel = functools.partial(_vmvae_classify_kernel, num_views=V, lp=lp)
    recon_pad, small, logits_pad = pl.pallas_call(
        kernel,
        in_specs=[pl.BlockSpec(memory_space=pltpu.MemorySpace.VMEM)] * n_in,
        out_specs=(pl.BlockSpec(memory_space=pltpu.MemorySpace.VMEM),
                   pl.BlockSpec(memory_space=pltpu.MemorySpace.VMEM),
                   pl.BlockSpec(memory_space=pltpu.MemorySpace.VMEM)),
        out_shape=(jax.ShapeDtypeStruct((V, B, d_pad), jnp.float32),
                   jax.ShapeDtypeStruct((V, B, 4 * lp), jnp.float32),
                   jax.ShapeDtypeStruct((B, lp), jnp.float32)),
        compiler_params=pltpu.CompilerParams(
            vmem_limit_bytes=16 * 1024 * 1024),   # actual use ~1 MB; < v7x's 64 MiB
    )(x_pad, eps_pad, mask, *packed)

    logits = logits_pad[:, :L]
    recons = [recon_pad[v, :, :input_dims[v]] for v in range(V)]
    mus = [small[v, :, 0:L] for v in range(V)]
    log_vars = [small[v, :, lp:lp + L] for v in range(V)]
    sample_z = [small[v, :, 3 * lp:3 * lp + L] for v in range(V)]
    # view-mixture weights pi (softmax over per-view gate logits)
    pi = jax.nn.softmax(small[:, :, 2 * lp].T, axis=1)               # (B, V)
    return logits, recons, mus, log_vars, sample_z, pi


# ----------------------------------------------------------------------------
# Pure-JAX reference (correctness check)
# ----------------------------------------------------------------------------
def _reference_forward(params, batch_inputs, missing_matrix, eps_list):
    def dense(x, wb, relu=False):
        y = x @ wb[0] + wb[1]
        return jnp.maximum(y, 0.0) if relu else y

    recons, mus, lvs, zs, pis = [], [], [], [], []
    for v, x in enumerate(batch_inputs):
        p = params["views"][v]
        e1 = dense(x, p["enc1"], True)
        e2 = dense(e1, p["enc2"], True)
        e3 = dense(e2, p["enc3"], True)
        mu = dense(e3, p["mu"])
        lv = dense(e3, p["logvar"])
        z = mu + jnp.exp(0.5 * lv) * eps_list[v]
        d1 = dense(z, p["dec1"], True)
        d2 = dense(d1, p["dec2"], True)
        d3 = dense(d2, p["dec3"], True)
        recons.append(dense(d3, p["dec4"]))
        pis.append(dense(e3, p["pi"]))
        mus.append(mu); lvs.append(lv); zs.append(z)
    pi = jax.nn.softmax(jnp.concatenate(pis, axis=1), axis=1)
    m = missing_matrix.astype(jnp.float32)
    mus_stack = jnp.stack(mus, axis=1)                               # (B, V, L)
    num = jnp.sum(mus_stack * m[:, :, None], axis=1)
    den = jnp.maximum(jnp.sum(m, axis=1, keepdims=True), 1.0)
    logits = dense(num / den, params["fc"])
    return logits, recons, mus, lvs, zs, pi


# ----------------------------------------------------------------------------
# Demo
# ----------------------------------------------------------------------------
if __name__ == "__main__":
    key = jax.random.PRNGKey(0)

    B = 8
    num_views = 3
    input_dims = (16, 20, 12)
    h1, h2, h3 = 32, 24, 16
    latent_dim = 8
    num_classes = 4  # kept for fidelity; reference fc maps latent_dim -> latent_dim

    d_pad = max(128, ((max(input_dims) + 127) // 128) * 128)   # lane-dense input width
    lp = max(128, ((latent_dim + 127) // 128) * 128)           # lane-dense latent width

    params = init_vmvae_classify_params(
        jax.random.fold_in(key, 1), num_views, input_dims, h1, h2, h3, latent_dim
    )
    packed = pack_vmvae_classify_params(params, d_pad, lp)      # packed ONCE

    # per-view inputs
    batch_inputs = []
    for v in range(num_views):
        kx = jax.random.fold_in(jax.random.fold_in(key, 2), v)
        batch_inputs.append(jax.random.normal(kx, (B, input_dims[v]), jnp.float32))

    # missing matrix (B, V) in {0,1}; guarantee every sample has >=1 observed view
    km = jax.random.fold_in(key, 3)
    missing_matrix = (jax.random.uniform(km, (B, num_views)) > 0.3).astype(jnp.float32)
    missing_matrix = missing_matrix.at[:, 0].set(1.0)

    # reparameterization noise (deterministic)
    eps_list = [
        jax.random.normal(jax.random.fold_in(jax.random.fold_in(key, 4), v),
                          (B, latent_dim), jnp.float32)
        for v in range(num_views)
    ]

    logits, recons, mus, log_vars, sample_z, pi = vmvae_classify_forward(
        packed, batch_inputs, missing_matrix, eps_list,
        input_dims=input_dims, latent_dim=latent_dim, d_pad=d_pad, lp=lp,
    )

    jax.block_until_ready(logits)
    jax.block_until_ready(recons)
    jax.block_until_ready(pi)

    assert logits.shape == (B, latent_dim)
    assert pi.shape == (B, num_views)
    for v in range(num_views):
        assert recons[v].shape == (B, input_dims[v])
        assert mus[v].shape == (B, latent_dim)
        assert log_vars[v].shape == (B, latent_dim)
        assert sample_z[v].shape == (B, latent_dim)

    # correctness vs pure-JAX reference
    r_logits, r_recons, r_mus, r_lvs, r_zs, r_pi = _reference_forward(
        params, batch_inputs, missing_matrix, eps_list
    )
    assert jnp.allclose(logits, r_logits, rtol=1e-3, atol=1e-3)
    assert jnp.allclose(pi, r_pi, rtol=1e-3, atol=1e-3)
    for v in range(num_views):
        assert jnp.allclose(recons[v], r_recons[v], rtol=1e-3, atol=1e-3)
        assert jnp.allclose(mus[v], r_mus[v], rtol=1e-3, atol=1e-3)
        assert jnp.allclose(log_vars[v], r_lvs[v], rtol=1e-3, atol=1e-3)
        assert jnp.allclose(sample_z[v], r_zs[v], rtol=1e-3, atol=1e-3)

    print("KERNEL_OK")
</pallas_src>

<mosaic_0001>
module attributes {stable_mosaic.version = 11 : i64} {
  func.func @_vmvae_classify_kernel(%arg0: memref<3x8x128xf32, #tpu.memory_space<vmem>>, %arg1: memref<3x8x128xf32, #tpu.memory_space<vmem>>, %arg2: memref<3x8x1xf32, #tpu.memory_space<vmem>>, %arg3: memref<3x128x32xf32, #tpu.memory_space<vmem>>, %arg4: memref<3x1x32xf32, #tpu.memory_space<vmem>>, %arg5: memref<3x32x24xf32, #tpu.memory_space<vmem>>, %arg6: memref<3x1x24xf32, #tpu.memory_space<vmem>>, %arg7: memref<3x24x16xf32, #tpu.memory_space<vmem>>, %arg8: memref<3x1x16xf32, #tpu.memory_space<vmem>>, %arg9: memref<3x16x384xf32, #tpu.memory_space<vmem>>, %arg10: memref<3x1x384xf32, #tpu.memory_space<vmem>>, %arg11: memref<3x128x16xf32, #tpu.memory_space<vmem>>, %arg12: memref<3x1x16xf32, #tpu.memory_space<vmem>>, %arg13: memref<3x16x24xf32, #tpu.memory_space<vmem>>, %arg14: memref<3x1x24xf32, #tpu.memory_space<vmem>>, %arg15: memref<3x24x32xf32, #tpu.memory_space<vmem>>, %arg16: memref<3x1x32xf32, #tpu.memory_space<vmem>>, %arg17: memref<3x32x128xf32, #tpu.memory_space<vmem>>, %arg18: memref<3x1x128xf32, #tpu.memory_space<vmem>>, %arg19: memref<128x128xf32, #tpu.memory_space<vmem>>, %arg20: memref<1x128xf32, #tpu.memory_space<vmem>>, %arg21: memref<3x8x128xf32, #tpu.memory_space<vmem>>, %arg22: memref<3x8x512xf32, #tpu.memory_space<vmem>>, %arg23: memref<8x128xf32, #tpu.memory_space<vmem>>) attributes {dimension_semantics = [], scalar_prefetch = 0 : i64, scratch_operands = 0 : i64, tpu.core_type = #tpu.core_type<tc>} {
    %cst = arith.constant 0.000000e+00 : f32
    %0 = vector.broadcast %cst : f32 to vector<8x128xf32>
    %cst_0 = arith.constant 0.000000e+00 : f32
    %1 = vector.broadcast %cst_0 : f32 to vector<8x1xf32>
    %c0 = arith.constant 0 : index
    %c0_1 = arith.constant 0 : index
    %c0_2 = arith.constant 0 : index
    %2 = vector.load %arg0[%c0, %c0_1, %c0_2] : memref<3x8x128xf32, #tpu.memory_space<vmem>>, vector<1x8x128xf32>
    %3 = vector.shape_cast %2 : vector<1x8x128xf32> to vector<8x128xf32>
    %c0_3 = arith.constant 0 : index
    %c0_4 = arith.constant 0 : index
    %c0_5 = arith.constant 0 : index
    %4 = vector.load %arg3[%c0_3, %c0_4, %c0_5] : memref<3x128x32xf32, #tpu.memory_space<vmem>>, vector<1x128x32xf32>
    %5 = vector.shape_cast %4 : vector<1x128x32xf32> to vector<128x32xf32>
    %c0_6 = arith.constant 0 : index
    %c0_7 = arith.constant 0 : index
    %c0_8 = arith.constant 0 : index
    %6 = vector.load %arg4[%c0_6, %c0_7, %c0_8] : memref<3x1x32xf32, #tpu.memory_space<vmem>>, vector<1x1x32xf32>
    %7 = vector.shape_cast %6 : vector<1x1x32xf32> to vector<1x32xf32>
    %cst_9 = arith.constant dense<0.000000e+00> : vector<8x32xf32>
    %8 = tpu.matmul %3, %5, %cst_9 {dimension_numbers = #tpu.dot_dimension_numbers<[1], [0], [0], [1], [0, 0, 1, 1], [], []>} : vector<8x128xf32>, vector<128x32xf32>, vector<8x32xf32> -> vector<8x32xf32>
    %9 = vector.broadcast %7 : vector<1x32xf32> to vector<8x32xf32>
    %10 = arith.addf %8, %9 : vector<8x32xf32>
    %cst_10 = arith.constant 0.000000e+00 : f32
    %11 = vector.broadcast %cst_10 : f32 to vector<8x32xf32>
    %12 = arith.maximumf %10, %11 : vector<8x32xf32>
    %c0_11 = arith.constant 0 : index
    %c0_12 = arith.constant 0 : index
    %c0_13 = arith.constant 0 : index
    %13 = vector.load %arg5[%c0_11, %c0_12, %c0_13] : memref<3x32x24xf32, #tpu.memory_space<vmem>>, vector<1x32x24xf32>
    %14 = vector.shape_cast %13 : vector<1x32x24xf32> to vector<32x24xf32>
    %c0_14 = arith.constant 0 : index
    %c0_15 = arith.constant 0 : index
    %c0_16 = arith.constant 0 : index
    %15 = vector.load %arg6[%c0_14, %c0_15, %c0_16] : memref<3x1x24xf32, #tpu.memory_space<vmem>>, vector<1x1x24xf32>
    %16 = vector.shape_cast %15 : vector<1x1x24xf32> to vector<1x24xf32>
    %cst_17 = arith.constant dense<0.000000e+00> : vector<8x24xf32>
    %17 = tpu.matmul %12, %14, %cst_17 {dimension_numbers = #tpu.dot_dimension_numbers<[1], [0], [0], [1], [0, 0, 1, 1], [], []>} : vector<8x32xf32>, vector<32x24xf32>, vector<8x24xf32> -> vector<8x24xf32>
    %18 = vector.broadcast %16 : vector<1x24xf32> to vector<8x24xf32>
    %19 = arith.addf %17, %18 : vector<8x24xf32>
    %cst_18 = arith.constant 0.000000e+00 : f32
    %20 = vector.broadcast %cst_18 : f32 to vector<8x24xf32>
    %21 = arith.maximumf %19, %20 : vector<8x24xf32>
    %c0_19 = arith.constant 0 : index
    %c0_20 = arith.constant 0 : index
    %c0_21 = arith.constant 0 : index
    %22 = vector.load %arg7[%c0_19, %c0_20, %c0_21] : memref<3x24x16xf32, #tpu.memory_space<vmem>>, vector<1x24x16xf32>
    %23 = vector.shape_cast %22 : vector<1x24x16xf32> to vector<24x16xf32>
    %c0_22 = arith.constant 0 : index
    %c0_23 = arith.constant 0 : index
    %c0_24 = arith.constant 0 : index
    %24 = vector.load %arg8[%c0_22, %c0_23, %c0_24] : memref<3x1x16xf32, #tpu.memory_space<vmem>>, vector<1x1x16xf32>
    %25 = vector.shape_cast %24 : vector<1x1x16xf32> to vector<1x16xf32>
    %cst_25 = arith.constant dense<0.000000e+00> : vector<8x16xf32>
    %26 = tpu.matmul %21, %23, %cst_25 {dimension_numbers = #tpu.dot_dimension_numbers<[1], [0], [0], [1], [0, 0, 1, 1], [], []>} : vector<8x24xf32>, vector<24x16xf32>, vector<8x16xf32> -> vector<8x16xf32>
    %27 = vector.broadcast %25 : vector<1x16xf32> to vector<8x16xf32>
    %28 = arith.addf %26, %27 : vector<8x16xf32>
    %cst_26 = arith.constant 0.000000e+00 : f32
    %29 = vector.broadcast %cst_26 : f32 to vector<8x16xf32>
    %30 = arith.maximumf %28, %29 : vector<8x16xf32>
    %c0_27 = arith.constant 0 : index
    %c0_28 = arith.constant 0 : index
    %c0_29 = arith.constant 0 : index
    %31 = vector.load %arg9[%c0_27, %c0_28, %c0_29] : memref<3x16x384xf32, #tpu.memory_space<vmem>>, vector<1x16x384xf32>
    %32 = vector.shape_cast %31 : vector<1x16x384xf32> to vector<16x384xf32>
    %c0_30 = arith.constant 0 : index
    %c0_31 = arith.constant 0 : index
    %c0_32 = arith.constant 0 : index
    %33 = vector.load %arg10[%c0_30, %c0_31, %c0_32] : memref<3x1x384xf32, #tpu.memory_space<vmem>>, vector<1x1x384xf32>
    %34 = vector.shape_cast %33 : vector<1x1x384xf32> to vector<1x384xf32>
    %cst_33 = arith.constant dense<0.000000e+00> : vector<8x384xf32>
    %35 = tpu.matmul %30, %32, %cst_33 {dimension_numbers = #tpu.dot_dimension_numbers<[1], [0], [0], [1], [0, 0, 1, 1], [], []>} : vector<8x16xf32>, vector<16x384xf32>, vector<8x384xf32> -> vector<8x384xf32>
    %36 = vector.broadcast %34 : vector<1x384xf32> to vector<8x384xf32>
    %37 = arith.addf %35, %36 : vector<8x384xf32>
    %38 = vector.extract_strided_slice %37 {offsets = [0, 0], sizes = [8, 128], strides = [1, 1]} : vector<8x384xf32> to vector<8x128xf32>
    %39 = vector.extract_strided_slice %37 {offsets = [0, 128], sizes = [8, 128], strides = [1, 1]} : vector<8x384xf32> to vector<8x128xf32>
    %cst_34 = arith.constant 5.000000e-01 : f32
    %40 = vector.broadcast %cst_34 : f32 to vector<8x128xf32>
    %41 = arith.mulf %40, %39 : vector<8x128xf32>
    %42 = math.exp %41 : vector<8x128xf32>
    %c0_35 = arith.constant 0 : index
    %c0_36 = arith.constant 0 : index
    %c0_37 = arith.constant 0 : index
    %43 = vector.load %arg1[%c0_35, %c0_36, %c0_37] : memref<3x8x128xf32, #tpu.memory_space<vmem>>, vector<1x8x128xf32>
    %44 = vector.shape_cast %43 : vector<1x8x128xf32> to vector<8x128xf32>
    %45 = arith.mulf %42, %44 : vector<8x128xf32>
    %46 = arith.addf %38, %45 : vector<8x128xf32>
    %c0_38 = arith.constant 0 : index
    %c0_39 = arith.constant 0 : index
    %c0_40 = arith.constant 0 : index
    %47 = vector.load %arg11[%c0_38, %c0_39, %c0_40] : memref<3x128x16xf32, #tpu.memory_space<vmem>>, vector<1x128x16xf32>
    %48 = vector.shape_cast %47 : vector<1x128x16xf32> to vector<128x16xf32>
    %c0_41 = arith.constant 0 : index
    %c0_42 = arith.constant 0 : index
    %c0_43 = arith.constant 0 : index
    %49 = vector.load %arg12[%c0_41, %c0_42, %c0_43] : memref<3x1x16xf32, #tpu.memory_space<vmem>>, vector<1x1x16xf32>
    %50 = vector.shape_cast %49 : vector<1x1x16xf32> to vector<1x16xf32>
    %cst_44 = arith.constant dense<0.000000e+00> : vector<8x16xf32>
    %51 = tpu.matmul %46, %48, %cst_44 {dimension_numbers = #tpu.dot_dimension_numbers<[1], [0], [0], [1], [0, 0, 1, 1], [], []>} : vector<8x128xf32>, vector<128x16xf32>, vector<8x16xf32> -> vector<8x16xf32>
    %52 = vector.broadcast %50 : vector<1x16xf32> to vector<8x16xf32>
    %53 = arith.addf %51, %52 : vector<8x16xf32>
    %cst_45 = arith.constant 0.000000e+00 : f32
    %54 = vector.broadcast %cst_45 : f32 to vector<8x16xf32>
    %55 = arith.maximumf %53, %54 : vector<8x16xf32>
    %c0_46 = arith.constant 0 : index
    %c0_47 = arith.constant 0 : index
    %c0_48 = arith.constant 0 : index
    %56 = vector.load %arg13[%c0_46, %c0_47, %c0_48] : memref<3x16x24xf32, #tpu.memory_space<vmem>>, vector<1x16x24xf32>
    %57 = vector.shape_cast %56 : vector<1x16x24xf32> to vector<16x24xf32>
    %c0_49 = arith.constant 0 : index
    %c0_50 = arith.constant 0 : index
    %c0_51 = arith.constant 0 : index
    %58 = vector.load %arg14[%c0_49, %c0_50, %c0_51] : memref<3x1x24xf32, #tpu.memory_space<vmem>>, vector<1x1x24xf32>
    %59 = vector.shape_cast %58 : vector<1x1x24xf32> to vector<1x24xf32>
    %cst_52 = arith.constant dense<0.000000e+00> : vector<8x24xf32>
    %60 = tpu.matmul %55, %57, %cst_52 {dimension_numbers = #tpu.dot_dimension_numbers<[1], [0], [0], [1], [0, 0, 1, 1], [], []>} : vector<8x16xf32>, vector<16x24xf32>, vector<8x24xf32> -> vector<8x24xf32>
    %61 = vector.broadcast %59 : vector<1x24xf32> to vector<8x24xf32>
    %62 = arith.addf %60, %61 : vector<8x24xf32>
    %cst_53 = arith.constant 0.000000e+00 : f32
    %63 = vector.broadcast %cst_53 : f32 to vector<8x24xf32>
    %64 = arith.maximumf %62, %63 : vector<8x24xf32>
    %c0_54 = arith.constant 0 : index
    %c0_55 = arith.constant 0 : index
    %c0_56 = arith.constant 0 : index
    %65 = vector.load %arg15[%c0_54, %c0_55, %c0_56] : memref<3x24x32xf32, #tpu.memory_space<vmem>>, vector<1x24x32xf32>
    %66 = vector.shape_cast %65 : vector<1x24x32xf32> to vector<24x32xf32>
    %c0_57 = arith.constant 0 : index
    %c0_58 = arith.constant 0 : index
    %c0_59 = arith.constant 0 : index
    %67 = vector.load %arg16[%c0_57, %c0_58, %c0_59] : memref<3x1x32xf32, #tpu.memory_space<vmem>>, vector<1x1x32xf32>
    %68 = vector.shape_cast %67 : vector<1x1x32xf32> to vector<1x32xf32>
    %cst_60 = arith.constant dense<0.000000e+00> : vector<8x32xf32>
    %69 = tpu.matmul %64, %66, %cst_60 {dimension_numbers = #tpu.dot_dimension_numbers<[1], [0], [0], [1], [0, 0, 1, 1], [], []>} : vector<8x24xf32>, vector<24x32xf32>, vector<8x32xf32> -> vector<8x32xf32>
    %70 = vector.broadcast %68 : vector<1x32xf32> to vector<8x32xf32>
    %71 = arith.addf %69, %70 : vector<8x32xf32>
    %cst_61 = arith.constant 0.000000e+00 : f32
    %72 = vector.broadcast %cst_61 : f32 to vector<8x32xf32>
    %73 = arith.maximumf %71, %72 : vector<8x32xf32>
    %c0_62 = arith.constant 0 : index
    %c0_63 = arith.constant 0 : index
    %c0_64 = arith.constant 0 : index
    %74 = vector.load %arg17[%c0_62, %c0_63, %c0_64] : memref<3x32x128xf32, #tpu.memory_space<vmem>>, vector<1x32x128xf32>
    %75 = vector.shape_cast %74 : vector<1x32x128xf32> to vector<32x128xf32>
    %c0_65 = arith.constant 0 : index
    %c0_66 = arith.constant 0 : index
    %c0_67 = arith.constant 0 : index
    %76 = vector.load %arg18[%c0_65, %c0_66, %c0_67] : memref<3x1x128xf32, #tpu.memory_space<vmem>>, vector<1x1x128xf32>
    %77 = vector.shape_cast %76 : vector<1x1x128xf32> to vector<1x128xf32>
    %cst_68 = arith.constant dense<0.000000e+00> : vector<8x128xf32>
    %78 = tpu.matmul %73, %75, %cst_68 {dimension_numbers = #tpu.dot_dimension_numbers<[1], [0], [0], [1], [0, 0, 1, 1], [], []>} : vector<8x32xf32>, vector<32x128xf32>, vector<8x128xf32> -> vector<8x128xf32>
    %79 = vector.broadcast %77 : vector<1x128xf32> to vector<8x128xf32>
    %80 = arith.addf %78, %79 : vector<8x128xf32>
    %c0_69 = arith.constant 0 : index
    %c0_70 = arith.constant 0 : index
    %c0_71 = arith.constant 0 : index
    %81 = vector.load %arg21[%c0_69, %c0_70, %c0_71] : memref<3x8x128xf32, #tpu.memory_space<vmem>>, vector<1x8x128xf32>
    %82 = vector.shape_cast %81 : vector<1x8x128xf32> to vector<8x128xf32>
    %83 = vector.shape_cast %80 : vector<8x128xf32> to vector<1x8x128xf32>
    tpu.vector_store %arg21[%c0_69, %c0_70, %c0_71], %83 {strides = array<i32>} : memref<3x8x128xf32, #tpu.memory_space<vmem>>, vector<1x8x128xf32>,
    %84 = tpu.concatenate %37, %46 in 1 : vector<8x384xf32>, vector<8x128xf32> -> vector<8x512xf32>
    %c0_72 = arith.constant 0 : index
    %c0_73 = arith.constant 0 : index
    %c0_74 = arith.constant 0 : index
    %85 = vector.load %arg22[%c0_72, %c0_73, %c0_74] : memref<3x8x512xf32, #tpu.memory_space<vmem>>, vector<1x8x512xf32>
    %86 = vector.shape_cast %85 : vector<1x8x512xf32> to vector<8x512xf32>
    %87 = vector.shape_cast %84 : vector<8x512xf32> to vector<1x8x512xf32>
    tpu.vector_store %arg22[%c0_72, %c0_73, %c0_74], %87 {strides = array<i32>} : memref<3x8x512xf32, #tpu.memory_space<vmem>>, vector<1x8x512xf32>,
    %c0_75 = arith.constant 0 : index
    %c0_76 = arith.constant 0 : index
    %c0_77 = arith.constant 0 : index
    %88 = vector.load %arg2[%c0_75, %c0_76, %c0_77] : memref<3x8x1xf32, #tpu.memory_space<vmem>>, vector<1x8x1xf32>
    %89 = vector.shape_cast %88 : vector<1x8x1xf32> to vector<8x1xf32>
    %90 = vector.broadcast %89 : vector<8x1xf32> to vector<8x128xf32>
    %91 = arith.mulf %38, %90 : vector<8x128xf32>
    %92 = arith.addf %0, %91 : vector<8x128xf32>
    %93 = arith.addf %1, %89 : vector<8x1xf32>
    %c1 = arith.constant 1 : index
    %c0_78 = arith.constant 0 : index
    %c0_79 = arith.constant 0 : index
    %94 = vector.load %arg0[%c1, %c0_78, %c0_79] : memref<3x8x128xf32, #tpu.memory_space<vmem>>, vector<1x8x128xf32>
    %95 = vector.shape_cast %94 : vector<1x8x128xf32> to vector<8x128xf32>
    %c1_80 = arith.constant 1 : index
    %c0_81 = arith.constant 0 : index
    %c0_82 = arith.constant 0 : index
    %96 = vector.load %arg3[%c1_80, %c0_81, %c0_82] : memref<3x128x32xf32, #tpu.memory_space<vmem>>, vector<1x128x32xf32>
    %97 = vector.shape_cast %96 : vector<1x128x32xf32> to vector<128x32xf32>
    %c1_83 = arith.constant 1 : index
    %c0_84 = arith.constant 0 : index
    %c0_85 = arith.constant 0 : index
    %98 = vector.load %arg4[%c1_83, %c0_84, %c0_85] : memref<3x1x32xf32, #tpu.memory_space<vmem>>, vector<1x1x32xf32>
    %99 = vector.shape_cast %98 : vector<1x1x32xf32> to vector<1x32xf32>
    %cst_86 = arith.constant dense<0.000000e+00> : vector<8x32xf32>
    %100 = tpu.matmul %95, %97, %cst_86 {dimension_numbers = #tpu.dot_dimension_numbers<[1], [0], [0], [1], [0, 0, 1, 1], [], []>} : vector<8x128xf32>, vector<128x32xf32>, vector<8x32xf32> -> vector<8x32xf32>
    %101 = vector.broadcast %99 : vector<1x32xf32> to vector<8x32xf32>
    %102 = arith.addf %100, %101 : vector<8x32xf32>
    %cst_87 = arith.constant 0.000000e+00 : f32
    %103 = vector.broadcast %cst_87 : f32 to vector<8x32xf32>
    %104 = arith.maximumf %102, %103 : vector<8x32xf32>
    %c1_88 = arith.constant 1 : index
    %c0_89 = arith.constant 0 : index
    %c0_90 = arith.constant 0 : index
    %105 = vector.load %arg5[%c1_88, %c0_89, %c0_90] : memref<3x32x24xf32, #tpu.memory_space<vmem>>, vector<1x32x24xf32>
    %106 = vector.shape_cast %105 : vector<1x32x24xf32> to vector<32x24xf32>
    %c1_91 = arith.constant 1 : index
    %c0_92 = arith.constant 0 : index
    %c0_93 = arith.constant 0 : index
    %107 = vector.load %arg6[%c1_91, %c0_92, %c0_93] : memref<3x1x24xf32, #tpu.memory_space<vmem>>, vector<1x1x24xf32>
    %108 = vector.shape_cast %107 : vector<1x1x24xf32> to vector<1x24xf32>
    %cst_94 = arith.constant dense<0.000000e+00> : vector<8x24xf32>
    %109 = tpu.matmul %104, %106, %cst_94 {dimension_numbers = #tpu.dot_dimension_numbers<[1], [0], [0], [1], [0, 0, 1, 1], [], []>} : vector<8x32xf32>, vector<32x24xf32>, vector<8x24xf32> -> vector<8x24xf32>
    %110 = vector.broadcast %108 : vector<1x24xf32> to vector<8x24xf32>
    %111 = arith.addf %109, %110 : vector<8x24xf32>
    %cst_95 = arith.constant 0.000000e+00 : f32
    %112 = vector.broadcast %cst_95 : f32 to vector<8x24xf32>
    %113 = arith.maximumf %111, %112 : vector<8x24xf32>
    %c1_96 = arith.constant 1 : index
    %c0_97 = arith.constant 0 : index
    %c0_98 = arith.constant 0 : index
    %114 = vector.load %arg7[%c1_96, %c0_97, %c0_98] : memref<3x24x16xf32, #tpu.memory_space<vmem>>, vector<1x24x16xf32>
    %115 = vector.shape_cast %114 : vector<1x24x16xf32> to vector<24x16xf32>
    %c1_99 = arith.constant 1 : index
    %c0_100 = arith.constant 0 : index
    %c0_101 = arith.constant 0 : index
    %116 = vector.load %arg8[%c1_99, %c0_100, %c0_101] : memref<3x1x16xf32, #tpu.memory_space<vmem>>, vector<1x1x16xf32>
    %117 = vector.shape_cast %116 : vector<1x1x16xf32> to vector<1x16xf32>
    %cst_102 = arith.constant dense<0.000000e+00> : vector<8x16xf32>
    %118 = tpu.matmul %113, %115, %cst_102 {dimension_numbers = #tpu.dot_dimension_numbers<[1], [0], [0], [1], [0, 0, 1, 1], [], []>} : vector<8x24xf32>, vector<24x16xf32>, vector<8x16xf32> -> vector<8x16xf32>
    %119 = vector.broadcast %117 : vector<1x16xf32> to vector<8x16xf32>
    %120 = arith.addf %118, %119 : vector<8x16xf32>
    %cst_103 = arith.constant 0.000000e+00 : f32
    %121 = vector.broadcast %cst_103 : f32 to vector<8x16xf32>
    %122 = arith.maximumf %120, %121 : vector<8x16xf32>
    %c1_104 = arith.constant 1 : index
    %c0_105 = arith.constant 0 : index
    %c0_106 = arith.constant 0 : index
    %123 = vector.load %arg9[%c1_104, %c0_105, %c0_106] : memref<3x16x384xf32, #tpu.memory_space<vmem>>, vector<1x16x384xf32>
    %124 = vector.shape_cast %123 : vector<1x16x384xf32> to vector<16x384xf32>
    %c1_107 = arith.constant 1 : index
    %c0_108 = arith.constant 0 : index
    %c0_109 = arith.constant 0 : index
    %125 = vector.load %arg10[%c1_107, %c0_108, %c0_109] : memref<3x1x384xf32, #tpu.memory_space<vmem>>, vector<1x1x384xf32>
    %126 = vector.shape_cast %125 : vector<1x1x384xf32> to vector<1x384xf32>
    %cst_110 = arith.constant dense<0.000000e+00> : vector<8x384xf32>
    %127 = tpu.matmul %122, %124, %cst_110 {dimension_numbers = #tpu.dot_dimension_numbers<[1], [0], [0], [1], [0, 0, 1, 1], [], []>} : vector<8x16xf32>, vector<16x384xf32>, vector<8x384xf32> -> vector<8x384xf32>
    %128 = vector.broadcast %126 : vector<1x384xf32> to vector<8x384xf32>
    %129 = arith.addf %127, %128 : vector<8x384xf32>
    %130 = vector.extract_strided_slice %129 {offsets = [0, 0], sizes = [8, 128], strides = [1, 1]} : vector<8x384xf32> to vector<8x128xf32>
    %131 = vector.extract_strided_slice %129 {offsets = [0, 128], sizes = [8, 128], strides = [1, 1]} : vector<8x384xf32> to vector<8x128xf32>
    %cst_111 = arith.constant 5.000000e-01 : f32
    %132 = vector.broadcast %cst_111 : f32 to vector<8x128xf32>
    %133 = arith.mulf %132, %131 : vector<8x128xf32>
    %134 = math.exp %133 : vector<8x128xf32>
    %c1_112 = arith.constant 1 : index
    %c0_113 = arith.constant 0 : index
    %c0_114 = arith.constant 0 : index
    %135 = vector.load %arg1[%c1_112, %c0_113, %c0_114] : memref<3x8x128xf32, #tpu.memory_space<vmem>>, vector<1x8x128xf32>
    %136 = vector.shape_cast %135 : vector<1x8x128xf32> to vector<8x128xf32>
    %137 = arith.mulf %134, %136 : vector<8x128xf32>
    %138 = arith.addf %130, %137 : vector<8x128xf32>
    %c1_115 = arith.constant 1 : index
    %c0_116 = arith.constant 0 : index
    %c0_117 = arith.constant 0 : index
    %139 = vector.load %arg11[%c1_115, %c0_116, %c0_117] : memref<3x128x16xf32, #tpu.memory_space<vmem>>, vector<1x128x16xf32>
    %140 = vector.shape_cast %139 : vector<1x128x16xf32> to vector<128x16xf32>
    %c1_118 = arith.constant 1 : index
    %c0_119 = arith.constant 0 : index
    %c0_120 = arith.constant 0 : index
    %141 = vector.load %arg12[%c1_118, %c0_119, %c0_120] : memref<3x1x16xf32, #tpu.memory_space<vmem>>, vector<1x1x16xf32>
    %142 = vector.shape_cast %141 : vector<1x1x16xf32> to vector<1x16xf32>
    %cst_121 = arith.constant dense<0.000000e+00> : vector<8x16xf32>
    %143 = tpu.matmul %138, %140, %cst_121 {dimension_numbers = #tpu.dot_dimension_numbers<[1], [0], [0], [1], [0, 0, 1, 1], [], []>} : vector<8x128xf32>, vector<128x16xf32>, vector<8x16xf32> -> vector<8x16xf32>
    %144 = vector.broadcast %142 : vector<1x16xf32> to vector<8x16xf32>
    %145 = arith.addf %143, %144 : vector<8x16xf32>
    %cst_122 = arith.constant 0.000000e+00 : f32
    %146 = vector.broadcast %cst_122 : f32 to vector<8x16xf32>
    %147 = arith.maximumf %145, %146 : vector<8x16xf32>
    %c1_123 = arith.constant 1 : index
    %c0_124 = arith.constant 0 : index
    %c0_125 = arith.constant 0 : index
    %148 = vector.load %arg13[%c1_123, %c0_124, %c0_125] : memref<3x16x24xf32, #tpu.memory_space<vmem>>, vector<1x16x24xf32>
    %149 = vector.shape_cast %148 : vector<1x16x24xf32> to vector<16x24xf32>
    %c1_126 = arith.constant 1 : index
    %c0_127 = arith.constant 0 : index
    %c0_128 = arith.constant 0 : index
    %150 = vector.load %arg14[%c1_126, %c0_127, %c0_128] : memref<3x1x24xf32, #tpu.memory_space<vmem>>, vector<1x1x24xf32>
    %151 = vector.shape_cast %150 : vector<1x1x24xf32> to vector<1x24xf32>
    %cst_129 = arith.constant dense<0.000000e+00> : vector<8x24xf32>
    %152 = tpu.matmul %147, %149, %cst_129 {dimension_numbers = #tpu.dot_dimension_numbers<[1], [0], [0], [1], [0, 0, 1, 1], [], []>} : vector<8x16xf32>, vector<16x24xf32>, vector<8x24xf32> -> vector<8x24xf32>
    %153 = vector.broadcast %151 : vector<1x24xf32> to vector<8x24xf32>
    %154 = arith.addf %152, %153 : vector<8x24xf32>
    %cst_130 = arith.constant 0.000000e+00 : f32
    %155 = vector.broadcast %cst_130 : f32 to vector<8x24xf32>
    %156 = arith.maximumf %154, %155 : vector<8x24xf32>
    %c1_131 = arith.constant 1 : index
    %c0_132 = arith.constant 0 : index
    %c0_133 = arith.constant 0 : index
    %157 = vector.load %arg15[%c1_131, %c0_132, %c0_133] : memref<3x24x32xf32, #tpu.memory_space<vmem>>, vector<1x24x32xf32>
    %158 = vector.shape_cast %157 : vector<1x24x32xf32> to vector<24x32xf32>
    %c1_134 = arith.constant 1 : index
    %c0_135 = arith.constant 0 : index
    %c0_136 = arith.constant 0 : index
    %159 = vector.load %arg16[%c1_134, %c0_135, %c0_136] : memref<3x1x32xf32, #tpu.memory_space<vmem>>, vector<1x1x32xf32>
    %160 = vector.shape_cast %159 : vector<1x1x32xf32> to vector<1x32xf32>
    %cst_137 = arith.constant dense<0.000000e+00> : vector<8x32xf32>
    %161 = tpu.matmul %156, %158, %cst_137 {dimension_numbers = #tpu.dot_dimension_numbers<[1], [0], [0], [1], [0, 0, 1, 1], [], []>} : vector<8x24xf32>, vector<24x32xf32>, vector<8x32xf32> -> vector<8x32xf32>
    %162 = vector.broadcast %160 : vector<1x32xf32> to vector<8x32xf32>
    %163 = arith.addf %161, %162 : vector<8x32xf32>
    %cst_138 = arith.constant 0.000000e+00 : f32
    %164 = vector.broadcast %cst_138 : f32 to vector<8x32xf32>
    %165 = arith.maximumf %163, %164 : vector<8x32xf32>
    %c1_139 = arith.constant 1 : index
    %c0_140 = arith.constant 0 : index
    %c0_141 = arith.constant 0 : index
    %166 = vector.load %arg17[%c1_139, %c0_140, %c0_141] : memref<3x32x128xf32, #tpu.memory_space<vmem>>, vector<1x32x128xf32>
    %167 = vector.shape_cast %166 : vector<1x32x128xf32> to vector<32x128xf32>
    %c1_142 = arith.constant 1 : index
    %c0_143 = arith.constant 0 : index
    %c0_144 = arith.constant 0 : index
    %168 = vector.load %arg18[%c1_142, %c0_143, %c0_144] : memref<3x1x128xf32, #tpu.memory_space<vmem>>, vector<1x1x128xf32>
    %169 = vector.shape_cast %168 : vector<1x1x128xf32> to vector<1x128xf32>
    %cst_145 = arith.constant dense<0.000000e+00> : vector<8x128xf32>
    %170 = tpu.matmul %165, %167, %cst_145 {dimension_numbers = #tpu.dot_dimension_numbers<[1], [0], [0], [1], [0, 0, 1, 1], [], []>} : vector<8x32xf32>, vector<32x128xf32>, vector<8x128xf32> -> vector<8x128xf32>
    %171 = vector.broadcast %169 : vector<1x128xf32> to vector<8x128xf32>
    %172 = arith.addf %170, %171 : vector<8x128xf32>
    %c1_146 = arith.constant 1 : index
    %c0_147 = arith.constant 0 : index
    %c0_148 = arith.constant 0 : index
    %173 = vector.load %arg21[%c1_146, %c0_147, %c0_148] : memref<3x8x128xf32, #tpu.memory_space<vmem>>, vector<1x8x128xf32>
    %174 = vector.shape_cast %173 : vector<1x8x128xf32> to vector<8x128xf32>
    %175 = vector.shape_cast %172 : vector<8x128xf32> to vector<1x8x128xf32>
    tpu.vector_store %arg21[%c1_146, %c0_147, %c0_148], %175 {strides = array<i32>} : memref<3x8x128xf32, #tpu.memory_space<vmem>>, vector<1x8x128xf32>,
    %176 = tpu.concatenate %129, %138 in 1 : vector<8x384xf32>, vector<8x128xf32> -> vector<8x512xf32>
    %c1_149 = arith.constant 1 : index
    %c0_150 = arith.constant 0 : index
    %c0_151 = arith.constant 0 : index
    %177 = vector.load %arg22[%c1_149, %c0_150, %c0_151] : memref<3x8x512xf32, #tpu.memory_space<vmem>>, vector<1x8x512xf32>
    %178 = vector.shape_cast %177 : vector<1x8x512xf32> to vector<8x512xf32>
    %179 = vector.shape_cast %176 : vector<8x512xf32> to vector<1x8x512xf32>
    tpu.vector_store %arg22[%c1_149, %c0_150, %c0_151], %179 {strides = array<i32>} : memref<3x8x512xf32, #tpu.memory_space<vmem>>, vector<1x8x512xf32>,
    %c1_152 = arith.constant 1 : index
    %c0_153 = arith.constant 0 : index
    %c0_154 = arith.constant 0 : index
    %180 = vector.load %arg2[%c1_152, %c0_153, %c0_154] : memref<3x8x1xf32, #tpu.memory_space<vmem>>, vector<1x8x1xf32>
    %181 = vector.shape_cast %180 : vector<1x8x1xf32> to vector<8x1xf32>
    %182 = vector.broadcast %181 : vector<8x1xf32> to vector<8x128xf32>
    %183 = arith.mulf %130, %182 : vector<8x128xf32>
    %184 = arith.addf %92, %183 : vector<8x128xf32>
    %185 = arith.addf %93, %181 : vector<8x1xf32>
    %c2 = arith.constant 2 : index
    %c0_155 = arith.constant 0 : index
    %c0_156 = arith.constant 0 : index
    %186 = vector.load %arg0[%c2, %c0_155, %c0_156] : memref<3x8x128xf32, #tpu.memory_space<vmem>>, vector<1x8x128xf32>
    %187 = vector.shape_cast %186 : vector<1x8x128xf32> to vector<8x128xf32>
    %c2_157 = arith.constant 2 : index
    %c0_158 = arith.constant 0 : index
    %c0_159 = arith.constant 0 : index
    %188 = vector.load %arg3[%c2_157, %c0_158, %c0_159] : memref<3x128x32xf32, #tpu.memory_space<vmem>>, vector<1x128x32xf32>
    %189 = vector.shape_cast %188 : vector<1x128x32xf32> to vector<128x32xf32>
    %c2_160 = arith.constant 2 : index
    %c0_161 = arith.constant 0 : index
    %c0_162 = arith.constant 0 : index
    %190 = vector.load %arg4[%c2_160, %c0_161, %c0_162] : memref<3x1x32xf32, #tpu.memory_space<vmem>>, vector<1x1x32xf32>
    %191 = vector.shape_cast %190 : vector<1x1x32xf32> to vector<1x32xf32>
    %cst_163 = arith.constant dense<0.000000e+00> : vector<8x32xf32>
    %192 = tpu.matmul %187, %189, %cst_163 {dimension_numbers = #tpu.dot_dimension_numbers<[1], [0], [0], [1], [0, 0, 1, 1], [], []>} : vector<8x128xf32>, vector<128x32xf32>, vector<8x32xf32> -> vector<8x32xf32>
    %193 = vector.broadcast %191 : vector<1x32xf32> to vector<8x32xf32>
    %194 = arith.addf %192, %193 : vector<8x32xf32>
    %cst_164 = arith.constant 0.000000e+00 : f32
    %195 = vector.broadcast %cst_164 : f32 to vector<8x32xf32>
    %196 = arith.maximumf %194, %195 : vector<8x32xf32>
    %c2_165 = arith.constant 2 : index
    %c0_166 = arith.constant 0 : index
    %c0_167 = arith.constant 0 : index
    %197 = vector.load %arg5[%c2_165, %c0_166, %c0_167] : memref<3x32x24xf32, #tpu.memory_space<vmem>>, vector<1x32x24xf32>
    %198 = vector.shape_cast %197 : vector<1x32x24xf32> to vector<32x24xf32>
    %c2_168 = arith.constant 2 : index
    %c0_169 = arith.constant 0 : index
    %c0_170 = arith.constant 0 : index
    %199 = vector.load %arg6[%c2_168, %c0_169, %c0_170] : memref<3x1x24xf32, #tpu.memory_space<vmem>>, vector<1x1x24xf32>
    %200 = vector.shape_cast %199 : vector<1x1x24xf32> to vector<1x24xf32>
    %cst_171 = arith.constant dense<0.000000e+00> : vector<8x24xf32>
    %201 = tpu.matmul %196, %198, %cst_171 {dimension_numbers = #tpu.dot_dimension_numbers<[1], [0], [0], [1], [0, 0, 1, 1], [], []>} : vector<8x32xf32>, vector<32x24xf32>, vector<8x24xf32> -> vector<8x24xf32>
    %202 = vector.broadcast %200 : vector<1x24xf32> to vector<8x24xf32>
    %203 = arith.addf %201, %202 : vector<8x24xf32>
    %cst_172 = arith.constant 0.000000e+00 : f32
    %204 = vector.broadcast %cst_172 : f32 to vector<8x24xf32>
    %205 = arith.maximumf %203, %204 : vector<8x24xf32>
    %c2_173 = arith.constant 2 : index
    %c0_174 = arith.constant 0 : index
    %c0_175 = arith.constant 0 : index
    %206 = vector.load %arg7[%c2_173, %c0_174, %c0_175] : memref<3x24x16xf32, #tpu.memory_space<vmem>>, vector<1x24x16xf32>
    %207 = vector.shape_cast %206 : vector<1x24x16xf32> to vector<24x16xf32>
    %c2_176 = arith.constant 2 : index
    %c0_177 = arith.constant 0 : index
    %c0_178 = arith.constant 0 : index
    %208 = vector.load %arg8[%c2_176, %c0_177, %c0_178] : memref<3x1x16xf32, #tpu.memory_space<vmem>>, vector<1x1x16xf32>
    %209 = vector.shape_cast %208 : vector<1x1x16xf32> to vector<1x16xf32>
    %cst_179 = arith.constant dense<0.000000e+00> : vector<8x16xf32>
    %210 = tpu.matmul %205, %207, %cst_179 {dimension_numbers = #tpu.dot_dimension_numbers<[1], [0], [0], [1], [0, 0, 1, 1], [], []>} : vector<8x24xf32>, vector<24x16xf32>, vector<8x16xf32> -> vector<8x16xf32>
    %211 = vector.broadcast %209 : vector<1x16xf32> to vector<8x16xf32>
    %212 = arith.addf %210, %211 : vector<8x16xf32>
    %cst_180 = arith.constant 0.000000e+00 : f32
    %213 = vector.broadcast %cst_180 : f32 to vector<8x16xf32>
    %214 = arith.maximumf %212, %213 : vector<8x16xf32>
    %c2_181 = arith.constant 2 : index
    %c0_182 = arith.constant 0 : index
    %c0_183 = arith.constant 0 : index
    %215 = vector.load %arg9[%c2_181, %c0_182, %c0_183] : memref<3x16x384xf32, #tpu.memory_space<vmem>>, vector<1x16x384xf32>
    %216 = vector.shape_cast %215 : vector<1x16x384xf32> to vector<16x384xf32>
    %c2_184 = arith.constant 2 : index
    %c0_185 = arith.constant 0 : index
    %c0_186 = arith.constant 0 : index
    %217 = vector.load %arg10[%c2_184, %c0_185, %c0_186] : memref<3x1x384xf32, #tpu.memory_space<vmem>>, vector<1x1x384xf32>
    %218 = vector.shape_cast %217 : vector<1x1x384xf32> to vector<1x384xf32>
    %cst_187 = arith.constant dense<0.000000e+00> : vector<8x384xf32>
    %219 = tpu.matmul %214, %216, %cst_187 {dimension_numbers = #tpu.dot_dimension_numbers<[1], [0], [0], [1], [0, 0, 1, 1], [], []>} : vector<8x16xf32>, vector<16x384xf32>, vector<8x384xf32> -> vector<8x384xf32>
    %220 = vector.broadcast %218 : vector<1x384xf32> to vector<8x384xf32>
    %221 = arith.addf %219, %220 : vector<8x384xf32>
    %222 = vector.extract_strided_slice %221 {offsets = [0, 0], sizes = [8, 128], strides = [1, 1]} : vector<8x384xf32> to vector<8x128xf32>
    %223 = vector.extract_strided_slice %221 {offsets = [0, 128], sizes = [8, 128], strides = [1, 1]} : vector<8x384xf32> to vector<8x128xf32>
    %cst_188 = arith.constant 5.000000e-01 : f32
    %224 = vector.broadcast %cst_188 : f32 to vector<8x128xf32>
    %225 = arith.mulf %224, %223 : vector<8x128xf32>
    %226 = math.exp %225 : vector<8x128xf32>
    %c2_189 = arith.constant 2 : index
    %c0_190 = arith.constant 0 : index
    %c0_191 = arith.constant 0 : index
    %227 = vector.load %arg1[%c2_189, %c0_190, %c0_191] : memref<3x8x128xf32, #tpu.memory_space<vmem>>, vector<1x8x128xf32>
    %228 = vector.shape_cast %227 : vector<1x8x128xf32> to vector<8x128xf32>
    %229 = arith.mulf %226, %228 : vector<8x128xf32>
    %230 = arith.addf %222, %229 : vector<8x128xf32>
    %c2_192 = arith.constant 2 : index
    %c0_193 = arith.constant 0 : index
    %c0_194 = arith.constant 0 : index
    %231 = vector.load %arg11[%c2_192, %c0_193, %c0_194] : memref<3x128x16xf32, #tpu.memory_space<vmem>>, vector<1x128x16xf32>
    %232 = vector.shape_cast %231 : vector<1x128x16xf32> to vector<128x16xf32>
    %c2_195 = arith.constant 2 : index
    %c0_196 = arith.constant 0 : index
    %c0_197 = arith.constant 0 : index
    %233 = vector.load %arg12[%c2_195, %c0_196, %c0_197] : memref<3x1x16xf32, #tpu.memory_space<vmem>>, vector<1x1x16xf32>
    %234 = vector.shape_cast %233 : vector<1x1x16xf32> to vector<1x16xf32>
    %cst_198 = arith.constant dense<0.000000e+00> : vector<8x16xf32>
    %235 = tpu.matmul %230, %232, %cst_198 {dimension_numbers = #tpu.dot_dimension_numbers<[1], [0], [0], [1], [0, 0, 1, 1], [], []>} : vector<8x128xf32>, vector<128x16xf32>, vector<8x16xf32> -> vector<8x16xf32>
    %236 = vector.broadcast %234 : vector<1x16xf32> to vector<8x16xf32>
    %237 = arith.addf %235, %236 : vector<8x16xf32>
    %cst_199 = arith.constant 0.000000e+00 : f32
    %238 = vector.broadcast %cst_199 : f32 to vector<8x16xf32>
    %239 = arith.maximumf %237, %238 : vector<8x16xf32>
    %c2_200 = arith.constant 2 : index
    %c0_201 = arith.constant 0 : index
    %c0_202 = arith.constant 0 : index
    %240 = vector.load %arg13[%c2_200, %c0_201, %c0_202] : memref<3x16x24xf32, #tpu.memory_space<vmem>>, vector<1x16x24xf32>
    %241 = vector.shape_cast %240 : vector<1x16x24xf32> to vector<16x24xf32>
    %c2_203 = arith.constant 2 : index
    %c0_204 = arith.constant 0 : index
    %c0_205 = arith.constant 0 : index
    %242 = vector.load %arg14[%c2_203, %c0_204, %c0_205] : memref<3x1x24xf32, #tpu.memory_space<vmem>>, vector<1x1x24xf32>
    %243 = vector.shape_cast %242 : vector<1x1x24xf32> to vector<1x24xf32>
    %cst_206 = arith.constant dense<0.000000e+00> : vector<8x24xf32>
    %244 = tpu.matmul %239, %241, %cst_206 {dimension_numbers = #tpu.dot_dimension_numbers<[1], [0], [0], [1], [0, 0, 1, 1], [], []>} : vector<8x16xf32>, vector<16x24xf32>, vector<8x24xf32> -> vector<8x24xf32>
    %245 = vector.broadcast %243 : vector<1x24xf32> to vector<8x24xf32>
    %246 = arith.addf %244, %245 : vector<8x24xf32>
    %cst_207 = arith.constant 0.000000e+00 : f32
    %247 = vector.broadcast %cst_207 : f32 to vector<8x24xf32>
    %248 = arith.maximumf %246, %247 : vector<8x24xf32>
    %c2_208 = arith.constant 2 : index
    %c0_209 = arith.constant 0 : index
    %c0_210 = arith.constant 0 : index
    %249 = vector.load %arg15[%c2_208, %c0_209, %c0_210] : memref<3x24x32xf32, #tpu.memory_space<vmem>>, vector<1x24x32xf32>
    %250 = vector.shape_cast %249 : vector<1x24x32xf32> to vector<24x32xf32>
    %c2_211 = arith.constant 2 : index
    %c0_212 = arith.constant 0 : index
    %c0_213 = arith.constant 0 : index
    %251 = vector.load %arg16[%c2_211, %c0_212, %c0_213] : memref<3x1x32xf32, #tpu.memory_space<vmem>>, vector<1x1x32xf32>
    %252 = vector.shape_cast %251 : vector<1x1x32xf32> to vector<1x32xf32>
    %cst_214 = arith.constant dense<0.000000e+00> : vector<8x32xf32>
    %253 = tpu.matmul %248, %250, %cst_214 {dimension_numbers = #tpu.dot_dimension_numbers<[1], [0], [0], [1], [0, 0, 1, 1], [], []>} : vector<8x24xf32>, vector<24x32xf32>, vector<8x32xf32> -> vector<8x32xf32>
    %254 = vector.broadcast %252 : vector<1x32xf32> to vector<8x32xf32>
    %255 = arith.addf %253, %254 : vector<8x32xf32>
    %cst_215 = arith.constant 0.000000e+00 : f32
    %256 = vector.broadcast %cst_215 : f32 to vector<8x32xf32>
    %257 = arith.maximumf %255, %256 : vector<8x32xf32>
    %c2_216 = arith.constant 2 : index
    %c0_217 = arith.constant 0 : index
    %c0_218 = arith.constant 0 : index
    %258 = vector.load %arg17[%c2_216, %c0_217, %c0_218] : memref<3x32x128xf32, #tpu.memory_space<vmem>>, vector<1x32x128xf32>
    %259 = vector.shape_cast %258 : vector<1x32x128xf32> to vector<32x128xf32>
    %c2_219 = arith.constant 2 : index
    %c0_220 = arith.constant 0 : index
    %c0_221 = arith.constant 0 : index
    %260 = vector.load %arg18[%c2_219, %c0_220, %c0_221] : memref<3x1x128xf32, #tpu.memory_space<vmem>>, vector<1x1x128xf32>
    %261 = vector.shape_cast %260 : vector<1x1x128xf32> to vector<1x128xf32>
    %cst_222 = arith.constant dense<0.000000e+00> : vector<8x128xf32>
    %262 = tpu.matmul %257, %259, %cst_222 {dimension_numbers = #tpu.dot_dimension_numbers<[1], [0], [0], [1], [0, 0, 1, 1], [], []>} : vector<8x32xf32>, vector<32x128xf32>, vector<8x128xf32> -> vector<8x128xf32>
    %263 = vector.broadcast %261 : vector<1x128xf32> to vector<8x128xf32>
    %264 = arith.addf %262, %263 : vector<8x128xf32>
    %c2_223 = arith.constant 2 : index
    %c0_224 = arith.constant 0 : index
    %c0_225 = arith.constant 0 : index
    %265 = vector.load %arg21[%c2_223, %c0_224, %c0_225] : memref<3x8x128xf32, #tpu.memory_space<vmem>>, vector<1x8x128xf32>
    %266 = vector.shape_cast %265 : vector<1x8x128xf32> to vector<8x128xf32>
    %267 = vector.shape_cast %264 : vector<8x128xf32> to vector<1x8x128xf32>
    tpu.vector_store %arg21[%c2_223, %c0_224, %c0_225], %267 {strides = array<i32>} : memref<3x8x128xf32, #tpu.memory_space<vmem>>, vector<1x8x128xf32>,
    %268 = tpu.concatenate %221, %230 in 1 : vector<8x384xf32>, vector<8x128xf32> -> vector<8x512xf32>
    %c2_226 = arith.constant 2 : index
    %c0_227 = arith.constant 0 : index
    %c0_228 = arith.constant 0 : index
    %269 = vector.load %arg22[%c2_226, %c0_227, %c0_228] : memref<3x8x512xf32, #tpu.memory_space<vmem>>, vector<1x8x512xf32>
    %270 = vector.shape_cast %269 : vector<1x8x512xf32> to vector<8x512xf32>
    %271 = vector.shape_cast %268 : vector<8x512xf32> to vector<1x8x512xf32>
    tpu.vector_store %arg22[%c2_226, %c0_227, %c0_228], %271 {strides = array<i32>} : memref<3x8x512xf32, #tpu.memory_space<vmem>>, vector<1x8x512xf32>,
    %c2_229 = arith.constant 2 : index
    %c0_230 = arith.constant 0 : index
    %c0_231 = arith.constant 0 : index
    %272 = vector.load %arg2[%c2_229, %c0_230, %c0_231] : memref<3x8x1xf32, #tpu.memory_space<vmem>>, vector<1x8x1xf32>
    %273 = vector.shape_cast %272 : vector<1x8x1xf32> to vector<8x1xf32>
    %274 = vector.broadcast %273 : vector<8x1xf32> to vector<8x128xf32>
    %275 = arith.mulf %222, %274 : vector<8x128xf32>
    %276 = arith.addf %184, %275 : vector<8x128xf32>
    %277 = arith.addf %185, %273 : vector<8x1xf32>
    %cst_232 = arith.constant 1.000000e+00 : f32
    %278 = vector.broadcast %cst_232 : f32 to vector<8x1xf32>
    %279 = arith.maximumf %277, %278 : vector<8x1xf32>
    %280 = vector.broadcast %279 : vector<8x1xf32> to vector<8x128xf32>
    %281 = arith.divf %276, %280 : vector<8x128xf32>
    %c0_233 = arith.constant 0 : index
    %c0_234 = arith.constant 0 : index
    %282 = vector.load %arg19[%c0_233, %c0_234] : memref<128x128xf32, #tpu.memory_space<vmem>>, vector<128x128xf32>
    %cst_235 = arith.constant dense<0.000000e+00> : vector<8x128xf32>
    %283 = tpu.matmul %281, %282, %cst_235 {dimension_numbers = #tpu.dot_dimension_numbers<[1], [0], [0], [1], [0, 0, 1, 1], [], []>} : vector<8x128xf32>, vector<128x128xf32>, vector<8x128xf32> -> vector<8x128xf32>
    %c0_236 = arith.constant 0 : index
    %c0_237 = arith.constant 0 : index
    %284 = vector.load %arg20[%c0_236, %c0_237] : memref<1x128xf32, #tpu.memory_space<vmem>>, vector<1x128xf32>
    %285 = vector.broadcast %284 : vector<1x128xf32> to vector<8x128xf32>
    %286 = arith.addf %283, %285 : vector<8x128xf32>
    %c0_238 = arith.constant 0 : index
    %c0_239 = arith.constant 0 : index
    %287 = vector.load %arg23[%c0_238, %c0_239] : memref<8x128xf32, #tpu.memory_space<vmem>>, vector<8x128xf32>
    tpu.vector_store %arg23[%c0_238, %c0_239], %286 {strides = array<i32>} : memref<8x128xf32, #tpu.memory_space<vmem>>, vector<8x128xf32>,
    return
  }
}

</mosaic_0001>

<llo_original>
// kernel: vmvae_classify_forward.1
$region0: #{vmvae_classify_forward.1}
  #allocation0 [shape = 'u32[]', space=smem, size = 0x4, offset = 0x4, fixed_abs, tag = 'smem constant byte address 0x4 - core index']
  #allocation1 [shape = 'u32[72,128]{1,0:T(1,128)}', space=vmem, size = 0x9000, scoped, tag = 'internal scratch']
  %s0 = inlined_call_operand.vmem [shape: f32[3,8,128], index: 0, kind: input, shape index: {}]
  %s1 = inlined_call_operand.vmem [shape: f32[3,8,128], index: 1, kind: input, shape index: {}]
  %s2 = inlined_call_operand.vmem [shape: f32[3,8,1], index: 2, kind: input, shape index: {}]
  %s3 = inlined_call_operand.vmem [shape: f32[3,128,32], index: 3, kind: input, shape index: {}]
  %s4 = inlined_call_operand.vmem [shape: f32[3,1,32], index: 4, kind: input, shape index: {}]
  %s5 = inlined_call_operand.vmem [shape: f32[3,32,24], index: 5, kind: input, shape index: {}]
  %s6 = inlined_call_operand.vmem [shape: f32[3,1,24], index: 6, kind: input, shape index: {}]
  %s7 = inlined_call_operand.vmem [shape: f32[3,24,16], index: 7, kind: input, shape index: {}]
  %s8 = inlined_call_operand.vmem [shape: f32[3,1,16], index: 8, kind: input, shape index: {}]
  %s9 = inlined_call_operand.vmem [shape: f32[3,16,384], index: 9, kind: input, shape index: {}]
  %s10 = inlined_call_operand.vmem [shape: f32[3,1,384], index: 10, kind: input, shape index: {}]
  %s11 = inlined_call_operand.vmem [shape: f32[3,128,16], index: 11, kind: input, shape index: {}]
  %s12 = inlined_call_operand.vmem [shape: f32[3,1,16], index: 12, kind: input, shape index: {}]
  %s13 = inlined_call_operand.vmem [shape: f32[3,16,24], index: 13, kind: input, shape index: {}]
  %s14 = inlined_call_operand.vmem [shape: f32[3,1,24], index: 14, kind: input, shape index: {}]
  %s15 = inlined_call_operand.vmem [shape: f32[3,24,32], index: 15, kind: input, shape index: {}]
  %s16 = inlined_call_operand.vmem [shape: f32[3,1,32], index: 16, kind: input, shape index: {}]
  %s17 = inlined_call_operand.vmem [shape: f32[3,32,128], index: 17, kind: input, shape index: {}]
  %s18 = inlined_call_operand.vmem [shape: f32[3,1,128], index: 18, kind: input, shape index: {}]
  %s19 = inlined_call_operand.vmem [shape: f32[128,128], index: 19, kind: input, shape index: {}]
  %s20 = inlined_call_operand.vmem [shape: f32[1,128], index: 20, kind: input, shape index: {}]
  %s21 = inlined_call_operand.vmem [shape: f32[3,8,128], index: 21, kind: output, shape index: {0}]
  %s22 = inlined_call_operand.vmem [shape: f32[3,8,512], index: 22, kind: output, shape index: {1}]
  %s23 = inlined_call_operand.hbm [shape: f32[8,128], index: 23, kind: output, shape index: {2}]
  %24 = xla_tuple %s21, %s22, %s23
  %s25 = sld [smem:[#allocation0]]
  $region110: #{vmvae_classify_forward.1} parent=0
    _
  %s27 = ssub.s32 1, %s25
  %s28 = scalar_select 0, %s27, %s25
  $region1: #{vmvae_classify_forward.1} parent=0
    #allocation2 [shape = 'u8[4096]{0}', space=vmem, size = 0x1000, scoped, tag = 'output window, operand 2, single buffered']
    #allocation3 [shape = 's32[1]{0}', space=sflag, size = 0x4, scoped, tag = 'scoped memory for vmvae_classify_forward.1']
    %29 = vsyncpa [#allocation3], 0
    // Predicated region
    $region2: #{vmvae_classify_forward.1} parent=1 // pred_check
      _
    $region3: #{vmvae_classify_forward.1} parent=1 // pred_check_branch
      %31 = sbr.rel (0) target = $region5
    $region4: #{vmvae_classify_forward.1} parent=1 // pred_region
      _
    $region5: #{vmvae_classify_forward.1} parent=1 // pred_fallthru
      _
    // Predicated region
    $region6: #{vmvae_classify_forward.1} parent=1 // pred_check
      _
    $region7: #{vmvae_classify_forward.1} parent=1 // pred_check_branch
      %33 = sbr.rel (0) target = $region9
    $region8: #{vmvae_classify_forward.1} parent=1 // pred_region
      _
    $region9: #{vmvae_classify_forward.1} parent=1 // pred_fallthru
      _
    // Predicated region
    $region10: #{vmvae_classify_forward.1} parent=1 // pred_check
      _
    $region11: #{vmvae_classify_forward.1} parent=1 // pred_check_branch
      %35 = sbr.rel (0) target = $region13
    $region12: #{vmvae_classify_forward.1} parent=1 // pred_region
      _
    $region13: #{vmvae_classify_forward.1} parent=1 // pred_fallthru
      _
    // Predicated region
    $region14: #{vmvae_classify_forward.1} parent=1 // pred_check
      _
    $region15: #{vmvae_classify_forward.1} parent=1 // pred_check_branch
      %37 = sbr.rel (0) target = $region17
    $region16: #{vmvae_classify_forward.1} parent=1 // pred_region
      _
    $region17: #{vmvae_classify_forward.1} parent=1 // pred_fallthru
      _
    // Predicated region
    $region18: #{vmvae_classify_forward.1} parent=1 // pred_check
      _
    $region19: #{vmvae_classify_forward.1} parent=1 // pred_check_branch
      %39 = sbr.rel (0) target = $region21
    $region20: #{vmvae_classify_forward.1} parent=1 // pred_region
      _
    $region21: #{vmvae_classify_forward.1} parent=1 // pred_fallthru
      _
    // Predicated region
    $region22: #{vmvae_classify_forward.1} parent=1 // pred_check
      _
    $region23: #{vmvae_classify_forward.1} parent=1 // pred_check_branch
      %41 = sbr.rel (0) target = $region25
    $region24: #{vmvae_classify_forward.1} parent=1 // pred_region
      _
    $region25: #{vmvae_classify_forward.1} parent=1 // pred_fallthru
      _
    // Predicated region
    $region26: #{vmvae_classify_forward.1} parent=1 // pred_check
      _
    $region27: #{vmvae_classify_forward.1} parent=1 // pred_check_branch
      %43 = sbr.rel (0) target = $region29
    $region28: #{vmvae_classify_forward.1} parent=1 // pred_region
      _
    $region29: #{vmvae_classify_forward.1} parent=1 // pred_fallthru
      _
    // Predicated region
    $region30: #{vmvae_classify_forward.1} parent=1 // pred_check
      _
    $region31: #{vmvae_classify_forward.1} parent=1 // pred_check_branch
      %45 = sbr.rel (0) target = $region33
    $region32: #{vmvae_classify_forward.1} parent=1 // pred_region
      _
    $region33: #{vmvae_classify_forward.1} parent=1 // pred_fallthru
      _
    // Predicated region
    $region34: #{vmvae_classify_forward.1} parent=1 // pred_check
      _
    $region35: #{vmvae_classify_forward.1} parent=1 // pred_check_branch
      %47 = sbr.rel (0) target = $region37
    $region36: #{vmvae_classify_forward.1} parent=1 // pred_region
      _
    $region37: #{vmvae_classify_forward.1} parent=1 // pred_fallthru
      _
    // Predicated region
    $region38: #{vmvae_classify_forward.1} parent=1 // pred_check
      _
    $region39: #{vmvae_classify_forward.1} parent=1 // pred_check_branch
      %49 = sbr.rel (0) target = $region41
    $region40: #{vmvae_classify_forward.1} parent=1 // pred_region
      _
    $region41: #{vmvae_classify_forward.1} parent=1 // pred_fallthru
      _
    // Predicated region
    $region42: #{vmvae_classify_forward.1} parent=1 // pred_check
      _
    $region43: #{vmvae_classify_forward.1} parent=1 // pred_check_branch
      %51 = sbr.rel (0) target = $region45
    $region44: #{vmvae_classify_forward.1} parent=1 // pred_region
      _
    $region45: #{vmvae_classify_forward.1} parent=1 // pred_fallthru
      _
    // Predicated region
    $region46: #{vmvae_classify_forward.1} parent=1 // pred_check
      _
    $region47: #{vmvae_classify_forward.1} parent=1 // pred_check_branch
      %53 = sbr.rel (0) target = $region49
    $region48: #{vmvae_classify_forward.1} parent=1 // pred_region
      _
    $region49: #{vmvae_classify_forward.1} parent=1 // pred_fallthru
      _
    // Predicated region
    $region50: #{vmvae_classify_forward.1} parent=1 // pred_check
      _
    $region51: #{vmvae_classify_forward.1} parent=1 // pred_check_branch
      %55 = sbr.rel (0) target = $region53
    $region52: #{vmvae_classify_forward.1} parent=1 // pred_region
      _
    $region53: #{vmvae_classify_forward.1} parent=1 // pred_fallthru
      _
    // Predicated region
    $region54: #{vmvae_classify_forward.1} parent=1 // pred_check
      _
    $region55: #{vmvae_classify_forward.1} parent=1 // pred_check_branch
      %57 = sbr.rel (0) target = $region57
    $region56: #{vmvae_classify_forward.1} parent=1 // pred_region
      _
    $region57: #{vmvae_classify_forward.1} parent=1 // pred_fallthru
      _
    // Predicated region
    $region58: #{vmvae_classify_forward.1} parent=1 // pred_check
      _
    $region59: #{vmvae_classify_forward.1} parent=1 // pred_check_branch
      %59 = sbr.rel (0) target = $region61
    $region60: #{vmvae_classify_forward.1} parent=1 // pred_region
      _
    $region61: #{vmvae_classify_forward.1} parent=1 // pred_fallthru
      _
    // Predicated region
    $region62: #{vmvae_classify_forward.1} parent=1 // pred_check
      _
    $region63: #{vmvae_classify_forward.1} parent=1 // pred_check_branch
      %61 = sbr.rel (0) target = $region65
    $region64: #{vmvae_classify_forward.1} parent=1 // pred_region
      _
    $region65: #{vmvae_classify_forward.1} parent=1 // pred_fallthru
      _
    // Predicated region
    $region66: #{vmvae_classify_forward.1} parent=1 // pred_check
      _
    $region67: #{vmvae_classify_forward.1} parent=1 // pred_check_branch
      %63 = sbr.rel (0) target = $region69
    $region68: #{vmvae_classify_forward.1} parent=1 // pred_region
      _
    $region69: #{vmvae_classify_forward.1} parent=1 // pred_fallthru
      _
    // Predicated region
    $region70: #{vmvae_classify_forward.1} parent=1 // pred_check
      _
    $region71: #{vmvae_classify_forward.1} parent=1 // pred_check_branch
      %65 = sbr.rel (0) target = $region73
    $region72: #{vmvae_classify_forward.1} parent=1 // pred_region
      _
    $region73: #{vmvae_classify_forward.1} parent=1 // pred_fallthru
      _
    // Predicated region
    $region74: #{vmvae_classify_forward.1} parent=1 // pred_check
      _
    $region75: #{vmvae_classify_forward.1} parent=1 // pred_check_branch
      %67 = sbr.rel (0) target = $region77
    $region76: #{vmvae_classify_forward.1} parent=1 // pred_region
      _
    $region77: #{vmvae_classify_forward.1} parent=1 // pred_fallthru
      _
    // Predicated region
    $region78: #{vmvae_classify_forward.1} parent=1 // pred_check
      _
    $region79: #{vmvae_classify_forward.1} parent=1 // pred_check_branch
      %69 = sbr.rel (0) target = $region81
    $region80: #{vmvae_classify_forward.1} parent=1 // pred_region
      _
    $region81: #{vmvae_classify_forward.1} parent=1 // pred_fallthru
      _
    // Predicated region
    $region82: #{vmvae_classify_forward.1} parent=1 // pred_check
      _
    $region83: #{vmvae_classify_forward.1} parent=1 // pred_check_branch
      %71 = sbr.rel (0) target = $region85
    $region84: #{vmvae_classify_forward.1} parent=1 // pred_region
      _
    $region85: #{vmvae_classify_forward.1} parent=1 // pred_fallthru
      _
    %v72 = vld [vmem:[%s0] sm:$0xff]
    %v73 = vld [vmem:[%s3] sm:$0xff]
    %v74 = vld [vmem:[%s3 + $0x8] sm:$0xff]
    %v75 = vld [vmem:[%s3 + $0x10] sm:$0xff]
    %v76 = vld [vmem:[%s3 + $0x18] sm:$0xff]
    %v77 = vld [vmem:[%s3 + $0x20] sm:$0xff]
    %v78 = vld [vmem:[%s3 + $0x28] sm:$0xff]
    %v79 = vld [vmem:[%s3 + $0x30] sm:$0xff]
    %v80 = vld [vmem:[%s3 + $0x38] sm:$0xff]
    %v81 = vld [vmem:[%s3 + $0x40] sm:$0xff]
    %v82 = vld [vmem:[%s3 + $0x48] sm:$0xff]
    %v83 = vld [vmem:[%s3 + $0x50] sm:$0xff]
    %v84 = vld [vmem:[%s3 + $0x58] sm:$0xff]
    %v85 = vld [vmem:[%s3 + $0x60] sm:$0xff]
    %v86 = vld [vmem:[%s3 + $0x68] sm:$0xff]
    %v87 = vld [vmem:[%s3 + $0x70] sm:$0xff]
    %v88 = vld [vmem:[%s3 + $0x78] sm:$0xff]
    %v89 = vld [vmem:[%s4] sm:$0x1]
    %v91 = vperm.slane %v89, 0
    %93 = vmatpush.msra.mxu0 %v88
    %94 = vmatpush.msra.mxu0 %v87
    %95 = vmatpush.msra.mxu0 %v86
    %96 = vmatpush.msra.mxu0 %v85
    %97 = vmatpush.msra.mxu0 %v84
    %98 = vmatpush.msra.mxu0 %v83
    %99 = vmatpush.msra.mxu0 %v82
    %100 = vmatpush.msra.mxu0 %v81
    %101 = vmatpush.msra.mxu0 %v80
    %102 = vmatpush.msra.mxu0 %v79
    %103 = vmatpush.msra.mxu0 %v78
    %104 = vmatpush.msra.mxu0 %v77
    %105 = vmatpush.msra.mxu0 %v76
    %106 = vmatpush.msra.mxu0 %v75
    %107 = vmatpush.msra.mxu0 %v74
    %108 = vmatpush.msra.mxu0 %v73
    %109 = vmatmul.f32.gmra.mxu0 %v72
    %v110 = vpop.f32.mrf.mxu0
    %v111 = vadd.f32 %v91, %v110
    %112 = vdwg.mxu0
    %v113 = vmax.f32 %v111, 0.0
    %v114 = vld [vmem:[%s5] sm:$0xff]
    %v115 = vld [vmem:[%s5 + $0x8] sm:$0xff]
    %v116 = vld [vmem:[%s5 + $0x10] sm:$0xff]
    %v117 = vld [vmem:[%s5 + $0x18] sm:$0xff]
    %v118 = vld [vmem:[%s6] sm:$0x1]
    %v120 = vperm.slane %v118, 0
    %vm122 = vcmask 261120
    %v124 = vsel %vm122, %v113, 0
    %126 = vmatpush.msra.mxu0 0.0
    %127 = vmatpush.msra.mxu0 0.0
    %128 = vmatpush.msra.mxu0 0.0
    %129 = vmatpush.msra.mxu0 0.0
    %130 = vmatpush.msra.mxu0 0.0
    %131 = vmatpush.msra.mxu0 0.0
    %132 = vmatpush.msra.mxu0 0.0
    %133 = vmatpush.msra.mxu0 0.0
    %134 = vmatpush.msra.mxu0 0.0
    %135 = vmatpush.msra.mxu0 0.0
    %136 = vmatpush.msra.mxu0 0.0
    %137 = vmatpush.msra.mxu0 0.0
    %138 = vmatpush.msra.mxu0 %v117
    %139 = vmatpush.msra.mxu0 %v116
    %140 = vmatpush.msra.mxu0 %v115
    %141 = vmatpush.msra.mxu0 %v114
    %142 = vmatmul.f32.gmra.mxu0 %v124
    %v143 = vpop.f32.mrf.mxu0
    %v144 = vadd.f32 %v120, %v143
    %145 = vdwg.mxu0
    %v146 = vmax.f32 %v144, 0.0
    %v147 = vld [vmem:[%s7] sm:$0xff]
    %v148 = vld [vmem:[%s7 + $0x8] sm:$0xff]
    %v149 = vld [vmem:[%s7 + $0x10] sm:$0xff]
    %v150 = vld [vmem:[%s8] sm:$0x1]
    %v152 = vperm.slane %v150, 0
    %vm154 = vcmask 195584
    %v156 = vsel %vm154, %v146, 0
    %158 = vmatpush.msra.mxu0 0.0
    %159 = vmatpush.msra.mxu0 0.0
    %160 = vmatpush.msra.mxu0 0.0
    %161 = vmatpush.msra.mxu0 0.0
    %162 = vmatpush.msra.mxu0 0.0
    %163 = vmatpush.msra.mxu0 0.0
    %164 = vmatpush.msra.mxu0 0.0
    %165 = vmatpush.msra.mxu0 0.0
    %166 = vmatpush.msra.mxu0 0.0
    %167 = vmatpush.msra.mxu0 0.0
    %168 = vmatpush.msra.mxu0 0.0
    %169 = vmatpush.msra.mxu0 0.0
    %170 = vmatpush.msra.mxu0 0.0
    %171 = vmatpush.msra.mxu0 %v149
    %172 = vmatpush.msra.mxu0 %v148
    %173 = vmatpush.msra.mxu0 %v147
    %174 = vmatmul.f32.gmra.mxu0 %v156
    %v175 = vpop.f32.mrf.mxu0
    %v176 = vadd.f32 %v152, %v175
    %177 = vdwg.mxu0
    %v178 = vmax.f32 %v176, 0.0
    %v179 = vld [vmem:[%s9] sm:$0xff]
    %v180 = vld [vmem:[%s9 + $0x8] sm:$0xff]
    %v181 = vld [vmem:[%s9 + $0x10] sm:$0xff]
    %v182 = vld [vmem:[%s9 + $0x18] sm:$0xff]
    %v183 = vld [vmem:[%s9 + $0x20] sm:$0xff]
    %v184 = vld [vmem:[%s9 + $0x28] sm:$0xff]
    %v185 = vld [vmem:[%s10] sm:$0x7]
    %v187 = vperm.slane %v185, 0
    %v188 = vperm.slane %v185, 1
    %v189 = vperm.slane %v185, 2
    %vm193 = vcmask 130048
    %v195 = vsel %vm193, %v178, 0
    %197 = vmatpush.msra.mxu0 0.0
    %198 = vmatpush.msra.mxu0 0.0
    %199 = vmatpush.msra.mxu0 0.0
    %200 = vmatpush.msra.mxu0 0.0
    %201 = vmatpush.msra.mxu0 0.0
    %202 = vmatpush.msra.mxu0 0.0
    %203 = vmatpush.msra.mxu0 0.0
    %204 = vmatpush.msra.mxu0 0.0
    %205 = vmatpush.msra.mxu0 0.0
    %206 = vmatpush.msra.mxu0 0.0
    %207 = vmatpush.msra.mxu0 0.0
    %208 = vmatpush.msra.mxu0 0.0
    %209 = vmatpush.msra.mxu0 0.0
    %210 = vmatpush.msra.mxu0 0.0
    %211 = vmatpush.msra.mxu0 %v182
    %212 = vmatpush.msra.mxu0 %v179
    %213 = vmatmul.f32.gmra.mxu0 %v195
    %v214 = vpop.f32.mrf.mxu0
    %v215 = vadd.f32 %v187, %v214
    %216 = vdwg.mxu0
    %217 = vmatpush.msra.mxu0 0.0
    %218 = vmatpush.msra.mxu0 0.0
    %219 = vmatpush.msra.mxu0 0.0
    %220 = vmatpush.msra.mxu0 0.0
    %221 = vmatpush.msra.mxu0 0.0
    %222 = vmatpush.msra.mxu0 0.0
    %223 = vmatpush.msra.mxu0 0.0
    %224 = vmatpush.msra.mxu0 0.0
    %225 = vmatpush.msra.mxu0 0.0
    %226 = vmatpush.msra.mxu0 0.0
    %227 = vmatpush.msra.mxu0 0.0
    %228 = vmatpush.msra.mxu0 0.0
    %229 = vmatpush.msra.mxu0 0.0
    %230 = vmatpush.msra.mxu0 0.0
    %231 = vmatpush.msra.mxu0 %v183
    %232 = vmatpush.msra.mxu0 %v180
    %233 = vmatmul.f32.gmra.mxu0 %v195
    %v234 = vpop.f32.mrf.mxu0
    %v235 = vadd.f32 %v188, %v234
    %236 = vdwg.mxu0
    %237 = vmatpush.msra.mxu0 0.0
    %238 = vmatpush.msra.mxu0 0.0
    %239 = vmatpush.msra.mxu0 0.0
    %240 = vmatpush.msra.mxu0 0.0
    %241 = vmatpush.msra.mxu0 0.0
    %242 = vmatpush.msra.mxu0 0.0
    %243 = vmatpush.msra.mxu0 0.0
    %244 = vmatpush.msra.mxu0 0.0
    %245 = vmatpush.msra.mxu0 0.0
    %246 = vmatpush.msra.mxu0 0.0
    %247 = vmatpush.msra.mxu0 0.0
    %248 = vmatpush.msra.mxu0 0.0
    %249 = vmatpush.msra.mxu0 0.0
    %250 = vmatpush.msra.mxu0 0.0
    %251 = vmatpush.msra.mxu0 %v184
    %252 = vmatpush.msra.mxu0 %v181
    %253 = vmatmul.f32.gmra.mxu0 %v195
    %v254 = vpop.f32.mrf.mxu0
    %v255 = vadd.f32 %v189, %v254
    %256 = vdwg.mxu0
    %v257 = vmul.f32 %v235, 0.5
    %v258 = vmul.f32 %v257, 1.442695
    %v259 = vpow.pop %v258
    %v260 = vld [vmem:[%s1] sm:$0xff]
    %v261 = vmul.f32 %v259, %v260
    %v262 = vadd.f32 %v215, %v261
    %v263 = vld [vmem:[%s11] sm:$0xff]
    %v264 = vld [vmem:[%s11 + $0x8] sm:$0xff]
    %v265 = vld [vmem:[%s11 + $0x10] sm:$0xff]
    %v266 = vld [vmem:[%s11 + $0x18] sm:$0xff]
    %v267 = vld [vmem:[%s11 + $0x20] sm:$0xff]
    %v268 = vld [vmem:[%s11 + $0x28] sm:$0xff]
    %v269 = vld [vmem:[%s11 + $0x30] sm:$0xff]
    %v270 = vld [vmem:[%s11 + $0x38] sm:$0xff]
    %v271 = vld [vmem:[%s11 + $0x40] sm:$0xff]
    %v272 = vld [vmem:[%s11 + $0x48] sm:$0xff]
    %v273 = vld [vmem:[%s11 + $0x50] sm:$0xff]
    %v274 = vld [vmem:[%s11 + $0x58] sm:$0xff]
    %v275 = vld [vmem:[%s11 + $0x60] sm:$0xff]
    %v276 = vld [vmem:[%s11 + $0x68] sm:$0xff]
    %v277 = vld [vmem:[%s11 + $0x70] sm:$0xff]
    %v278 = vld [vmem:[%s11 + $0x78] sm:$0xff]
    %v279 = vld [vmem:[%s12] sm:$0x1]
    %v281 = vperm.slane %v279, 0
    %283 = vmatpush.msra.mxu0 %v278
    %284 = vmatpush.msra.mxu0 %v277
    %285 = vmatpush.msra.mxu0 %v276
    %286 = vmatpush.msra.mxu0 %v275
    %287 = vmatpush.msra.mxu0 %v274
    %288 = vmatpush.msra.mxu0 %v273
    %289 = vmatpush.msra.mxu0 %v272
    %290 = vmatpush.msra.mxu0 %v271
    %291 = vmatpush.msra.mxu0 %v270
    %292 = vmatpush.msra.mxu0 %v269
    %293 = vmatpush.msra.mxu0 %v268
    %294 = vmatpush.msra.mxu0 %v267
    %295 = vmatpush.msra.mxu0 %v266
    %296 = vmatpush.msra.mxu0 %v265
    %297 = vmatpush.msra.mxu0 %v264
    %298 = vmatpush.msra.mxu0 %v263
    %299 = vmatmul.f32.gmra.mxu0 %v262
    %v300 = vpop.f32.mrf.mxu0
    %v301 = vadd.f32 %v281, %v300
    %302 = vdwg.mxu0
    %v303 = vmax.f32 %v301, 0.0
    %v304 = vld [vmem:[%s13] sm:$0xff]
    %v305 = vld [vmem:[%s13 + $0x8] sm:$0xff]
    %v306 = vld [vmem:[%s14] sm:$0x1]
    %v308 = vperm.slane %v306, 0
    %v311 = vsel %vm193, %v303, 0
    %313 = vmatpush.msra.mxu0 0.0
    %314 = vmatpush.msra.mxu0 0.0
    %315 = vmatpush.msra.mxu0 0.0
    %316 = vmatpush.msra.mxu0 0.0
    %317 = vmatpush.msra.mxu0 0.0
    %318 = vmatpush.msra.mxu0 0.0
    %319 = vmatpush.msra.mxu0 0.0
    %320 = vmatpush.msra.mxu0 0.0
    %321 = vmatpush.msra.mxu0 0.0
    %322 = vmatpush.msra.mxu0 0.0
    %323 = vmatpush.msra.mxu0 0.0
    %324 = vmatpush.msra.mxu0 0.0
    %325 = vmatpush.msra.mxu0 0.0
    %326 = vmatpush.msra.mxu0 0.0
    %327 = vmatpush.msra.mxu0 %v305
    %328 = vmatpush.msra.mxu0 %v304
    %329 = vmatmul.f32.gmra.mxu0 %v311
    %v330 = vpop.f32.mrf.mxu0
    %v331 = vadd.f32 %v308, %v330
    %332 = vdwg.mxu0
    %v333 = vmax.f32 %v331, 0.0
    %v334 = vld [vmem:[%s15] sm:$0xff]
    %v335 = vld [vmem:[%s15 + $0x8] sm:$0xff]
    %v336 = vld [vmem:[%s15 + $0x10] sm:$0xff]
    %v337 = vld [vmem:[%s16] sm:$0x1]
    %v339 = vperm.slane %v337, 0
    %v342 = vsel %vm154, %v333, 0
    %344 = vmatpush.msra.mxu0 0.0
    %345 = vmatpush.msra.mxu0 0.0
    %346 = vmatpush.msra.mxu0 0.0
    %347 = vmatpush.msra.mxu0 0.0
    %348 = vmatpush.msra.mxu0 0.0
    %349 = vmatpush.msra.mxu0 0.0
    %350 = vmatpush.msra.mxu0 0.0
    %351 = vmatpush.msra.mxu0 0.0
    %352 = vmatpush.msra.mxu0 0.0
    %353 = vmatpush.msra.mxu0 0.0
    %354 = vmatpush.msra.mxu0 0.0
    %355 = vmatpush.msra.mxu0 0.0
    %356 = vmatpush.msra.mxu0 0.0
    %357 = vmatpush.msra.mxu0 %v336
    %358 = vmatpush.msra.mxu0 %v335
    %359 = vmatpush.msra.mxu0 %v334
    %360 = vmatmul.f32.gmra.mxu0 %v342
    %v361 = vpop.f32.mrf.mxu0
    %v362 = vadd.f32 %v339, %v361
    %363 = vdwg.mxu0
    %v364 = vmax.f32 %v362, 0.0
    %v365 = vld [vmem:[%s17] sm:$0xff]
    %v366 = vld [vmem:[%s17 + $0x8] sm:$0xff]
    %v367 = vld [vmem:[%s17 + $0x10] sm:$0xff]
    %v368 = vld [vmem:[%s17 + $0x18] sm:$0xff]
    %v369 = vld [vmem:[%s18] sm:$0x1]
    %v371 = vperm.slane %v369, 0
    %v374 = vsel %vm122, %v364, 0
    %376 = vmatpush.msra.mxu0 0.0
    %377 = vmatpush.msra.mxu0 0.0
    %378 = vmatpush.msra.mxu0 0.0
    %379 = vmatpush.msra.mxu0 0.0
    %380 = vmatpush.msra.mxu0 0.0
    %381 = vmatpush.msra.mxu0 0.0
    %382 = vmatpush.msra.mxu0 0.0
    %383 = vmatpush.msra.mxu0 0.0
    %384 = vmatpush.msra.mxu0 0.0
    %385 = vmatpush.msra.mxu0 0.0
    %386 = vmatpush.msra.mxu0 0.0
    %387 = vmatpush.msra.mxu0 0.0
    %388 = vmatpush.msra.mxu0 %v368
    %389 = vmatpush.msra.mxu0 %v367
    %390 = vmatpush.msra.mxu0 %v366
    %391 = vmatpush.msra.mxu0 %v365
    %392 = vmatmul.f32.gmra.mxu0 %v374
    %v393 = vpop.f32.mrf.mxu0
    %v394 = vadd.f32 %v371, %v393
    %395 = vdwg.mxu0
    %396 = vst [vmem:[%s21] sm:$0xff] %v394
    %397 = vst [vmem:[%s22] sm:$0xff] %v215
    %398 = vst [vmem:[%s22 + $0x8] sm:$0xff] %v235
    %399 = vst [vmem:[%s22 + $0x10] sm:$0xff] %v255
    %400 = vst [vmem:[%s22 + $0x18] sm:$0xff] %v262
    %v401 = vld [vmem:[%s2] sm:$0xff]
    %403 = vset.pattern.permute.xlu0 0
    %404 = vperm.xlu0 %403, %v401
    %v405 = vpop.permute.xlu0 %404
    %v407 = vmul.f32 %v215, %v405
    %v408 = vadd.f32 %v407, 0.0
    %v409 = vadd.f32 %v401, 0.0
    %s410 = scalar_lea.vmem %s0, 8
    %v411 = vld [vmem:[%s410] sm:$0xff]
    %s412 = scalar_lea.vmem %s3, 128
    %v413 = vld [vmem:[%s412] sm:$0xff]
    %v414 = vld [vmem:[%s412 + $0x8] sm:$0xff]
    %v415 = vld [vmem:[%s412 + $0x10] sm:$0xff]
    %v416 = vld [vmem:[%s412 + $0x18] sm:$0xff]
    %v417 = vld [vmem:[%s412 + $0x20] sm:$0xff]
    %v418 = vld [vmem:[%s412 + $0x28] sm:$0xff]
    %v419 = vld [vmem:[%s412 + $0x30] sm:$0xff]
    %v420 = vld [vmem:[%s412 + $0x38] sm:$0xff]
    %v421 = vld [vmem:[%s412 + $0x40] sm:$0xff]
    %v422 = vld [vmem:[%s412 + $0x48] sm:$0xff]
    %v423 = vld [vmem:[%s412 + $0x50] sm:$0xff]
    %v424 = vld [vmem:[%s412 + $0x58] sm:$0xff]
    %v425 = vld [vmem:[%s412 + $0x60] sm:$0xff]
    %v426 = vld [vmem:[%s412 + $0x68] sm:$0xff]
    %v427 = vld [vmem:[%s412 + $0x70] sm:$0xff]
    %v428 = vld [vmem:[%s412 + $0x78] sm:$0xff]
    %s429 = scalar_lea.vmem %s4, 1
    %v430 = vld [vmem:[%s429] sm:$0x1]
    %v432 = vperm.slane %v430, 0
    %434 = vmatpush.msra.mxu0 %v428
    %435 = vmatpush.msra.mxu0 %v427
    %436 = vmatpush.msra.mxu0 %v426
    %437 = vmatpush.msra.mxu0 %v425
    %438 = vmatpush.msra.mxu0 %v424
    %439 = vmatpush.msra.mxu0 %v423
    %440 = vmatpush.msra.mxu0 %v422
    %441 = vmatpush.msra.mxu0 %v421
    %442 = vmatpush.msra.mxu0 %v420
    %443 = vmatpush.msra.mxu0 %v419
    %444 = vmatpush.msra.mxu0 %v418
    %445 = vmatpush.msra.mxu0 %v417
    %446 = vmatpush.msra.mxu0 %v416
    %447 = vmatpush.msra.mxu0 %v415
    %448 = vmatpush.msra.mxu0 %v414
    %449 = vmatpush.msra.mxu0 %v413
    %450 = vmatmul.f32.gmra.mxu0 %v411
    %v451 = vpop.f32.mrf.mxu0
    %v452 = vadd.f32 %v432, %v451
    %453 = vdwg.mxu0
    %v454 = vmax.f32 %v452, 0.0
    %s455 = scalar_lea.vmem %s5, 32
    %v456 = vld [vmem:[%s455] sm:$0xff]
    %v457 = vld [vmem:[%s455 + $0x8] sm:$0xff]
    %v458 = vld [vmem:[%s455 + $0x10] sm:$0xff]
    %v459 = vld [vmem:[%s455 + $0x18] sm:$0xff]
    %s460 = scalar_lea.vmem %s6, 1
    %v461 = vld [vmem:[%s460] sm:$0x1]
    %v463 = vperm.slane %v461, 0
    %v466 = vsel %vm122, %v454, 0
    %468 = vmatpush.msra.mxu0 0.0
    %469 = vmatpush.msra.mxu0 0.0
    %470 = vmatpush.msra.mxu0 0.0
    %471 = vmatpush.msra.mxu0 0.0
    %472 = vmatpush.msra.mxu0 0.0
    %473 = vmatpush.msra.mxu0 0.0
    %474 = vmatpush.msra.mxu0 0.0
    %475 = vmatpush.msra.mxu0 0.0
    %476 = vmatpush.msra.mxu0 0.0
    %477 = vmatpush.msra.mxu0 0.0
    %478 = vmatpush.msra.mxu0 0.0
    %479 = vmatpush.msra.mxu0 0.0
    %480 = vmatpush.msra.mxu0 %v459
    %481 = vmatpush.msra.mxu0 %v458
    %482 = vmatpush.msra.mxu0 %v457
    %483 = vmatpush.msra.mxu0 %v456
    %484 = vmatmul.f32.gmra.mxu0 %v466
    %v485 = vpop.f32.mrf.mxu0
    %v486 = vadd.f32 %v463, %v485
    %487 = vdwg.mxu0
    %v488 = vmax.f32 %v486, 0.0
    %s489 = scalar_lea.vmem %s7, 24
    %v490 = vld [vmem:[%s489] sm:$0xff]
    %v491 = vld [vmem:[%s489 + $0x8] sm:$0xff]
    %v492 = vld [vmem:[%s489 + $0x10] sm:$0xff]
    %s493 = scalar_lea.vmem %s8, 1
    %v494 = vld [vmem:[%s493] sm:$0x1]
    %v496 = vperm.slane %v494, 0
    %v499 = vsel %vm154, %v488, 0
    %501 = vmatpush.msra.mxu0 0.0
    %502 = vmatpush.msra.mxu0 0.0
    %503 = vmatpush.msra.mxu0 0.0
    %504 = vmatpush.msra.mxu0 0.0
    %505 = vmatpush.msra.mxu0 0.0
    %506 = vmatpush.msra.mxu0 0.0
    %507 = vmatpush.msra.mxu0 0.0
    %508 = vmatpush.msra.mxu0 0.0
    %509 = vmatpush.msra.mxu0 0.0
    %510 = vmatpush.msra.mxu0 0.0
    %511 = vmatpush.msra.mxu0 0.0
    %512 = vmatpush.msra.mxu0 0.0
    %513 = vmatpush.msra.mxu0 0.0
    %514 = vmatpush.msra.mxu0 %v492
    %515 = vmatpush.msra.mxu0 %v491
    %516 = vmatpush.msra.mxu0 %v490
    %517 = vmatmul.f32.gmra.mxu0 %v499
    %v518 = vpop.f32.mrf.mxu0
    %v519 = vadd.f32 %v496, %v518
    %520 = vdwg.mxu0
    %v521 = vmax.f32 %v519, 0.0
    %s522 = scalar_lea.vmem %s9, 48
    %v523 = vld [vmem:[%s522] sm:$0xff]
    %v524 = vld [vmem:[%s522 + $0x8] sm:$0xff]
    %v525 = vld [vmem:[%s522 + $0x10] sm:$0xff]
    %v526 = vld [vmem:[%s522 + $0x18] sm:$0xff]
    %v527 = vld [vmem:[%s522 + $0x20] sm:$0xff]
    %v528 = vld [vmem:[%s522 + $0x28] sm:$0xff]
    %s529 = scalar_lea.vmem %s10, 3
    %v530 = vld [vmem:[%s529] sm:$0x7]
    %v532 = vperm.slane %v530, 0
    %v533 = vperm.slane %v530, 1
    %v534 = vperm.slane %v530, 2
    %v539 = vsel %vm193, %v521, 0
    %541 = vmatpush.msra.mxu0 0.0
    %542 = vmatpush.msra.mxu0 0.0
    %543 = vmatpush.msra.mxu0 0.0
    %544 = vmatpush.msra.mxu0 0.0
    %545 = vmatpush.msra.mxu0 0.0
    %546 = vmatpush.msra.mxu0 0.0
    %547 = vmatpush.msra.mxu0 0.0
    %548 = vmatpush.msra.mxu0 0.0
    %549 = vmatpush.msra.mxu0 0.0
    %550 = vmatpush.msra.mxu0 0.0
    %551 = vmatpush.msra.mxu0 0.0
    %552 = vmatpush.msra.mxu0 0.0
    %553 = vmatpush.msra.mxu0 0.0
    %554 = vmatpush.msra.mxu0 0.0
    %555 = vmatpush.msra.mxu0 %v526
    %556 = vmatpush.msra.mxu0 %v523
    %557 = vmatmul.f32.gmra.mxu0 %v539
    %v558 = vpop.f32.mrf.mxu0
    %v559 = vadd.f32 %v532, %v558
    %560 = vdwg.mxu0
    %561 = vmatpush.msra.mxu0 0.0
    %562 = vmatpush.msra.mxu0 0.0
    %563 = vmatpush.msra.mxu0 0.0
    %564 = vmatpush.msra.mxu0 0.0
    %565 = vmatpush.msra.mxu0 0.0
    %566 = vmatpush.msra.mxu0 0.0
    %567 = vmatpush.msra.mxu0 0.0
    %568 = vmatpush.msra.mxu0 0.0
    %569 = vmatpush.msra.mxu0 0.0
    %570 = vmatpush.msra.mxu0 0.0
    %571 = vmatpush.msra.mxu0 0.0
    %572 = vmatpush.msra.mxu0 0.0
    %573 = vmatpush.msra.mxu0 0.0
    %574 = vmatpush.msra.mxu0 0.0
    %575 = vmatpush.msra.mxu0 %v527
    %576 = vmatpush.msra.mxu0 %v524
    %577 = vmatmul.f32.gmra.mxu0 %v539
    %v578 = vpop.f32.mrf.mxu0
    %v579 = vadd.f32 %v533, %v578
    %580 = vdwg.mxu0
    %581 = vmatpush.msra.mxu0 0.0
    %582 = vmatpush.msra.mxu0 0.0
    %583 = vmatpush.msra.mxu0 0.0
    %584 = vmatpush.msra.mxu0 0.0
    %585 = vmatpush.msra.mxu0 0.0
    %586 = vmatpush.msra.mxu0 0.0
    %587 = vmatpush.msra.mxu0 0.0
    %588 = vmatpush.msra.mxu0 0.0
    %589 = vmatpush.msra.mxu0 0.0
    %590 = vmatpush.msra.mxu0 0.0
    %591 = vmatpush.msra.mxu0 0.0
    %592 = vmatpush.msra.mxu0 0.0
    %593 = vmatpush.msra.mxu0 0.0
    %594 = vmatpush.msra.mxu0 0.0
    %595 = vmatpush.msra.mxu0 %v528
    %596 = vmatpush.msra.mxu0 %v525
    %597 = vmatmul.f32.gmra.mxu0 %v539
    %v598 = vpop.f32.mrf.mxu0
    %v599 = vadd.f32 %v534, %v598
    %600 = vdwg.mxu0
    %v601 = vmul.f32 %v579, 0.5
    %v602 = vmul.f32 %v601, 1.442695
    %v603 = vpow.pop %v602
    %s604 = scalar_lea.vmem %s1, 8
    %v605 = vld [vmem:[%s604] sm:$0xff]
    %v606 = vmul.f32 %v603, %v605
    %v607 = vadd.f32 %v559, %v606
    %s608 = scalar_lea.vmem %s11, 128
    %v609 = vld [vmem:[%s608] sm:$0xff]
    %v610 = vld [vmem:[%s608 + $0x8] sm:$0xff]
    %v611 = vld [vmem:[%s608 + $0x10] sm:$0xff]
    %v612 = vld [vmem:[%s608 + $0x18] sm:$0xff]
    %v613 = vld [vmem:[%s608 + $0x20] sm:$0xff]
    %v614 = vld [vmem:[%s608 + $0x28] sm:$0xff]
    %v615 = vld [vmem:[%s608 + $0x30] sm:$0xff]
    %v616 = vld [vmem:[%s608 + $0x38] sm:$0xff]
    %v617 = vld [vmem:[%s608 + $0x40] sm:$0xff]
    %v618 = vld [vmem:[%s608 + $0x48] sm:$0xff]
    %v619 = vld [vmem:[%s608 + $0x50] sm:$0xff]
    %v620 = vld [vmem:[%s608 + $0x58] sm:$0xff]
    %v621 = vld [vmem:[%s608 + $0x60] sm:$0xff]
    %v622 = vld [vmem:[%s608 + $0x68] sm:$0xff]
    %v623 = vld [vmem:[%s608 + $0x70] sm:$0xff]
    %v624 = vld [vmem:[%s608 + $0x78] sm:$0xff]
    %s625 = scalar_lea.vmem %s12, 1
    %v626 = vld [vmem:[%s625] sm:$0x1]
    %v628 = vperm.slane %v626, 0
    %630 = vmatpush.msra.mxu0 %v624
    %631 = vmatpush.msra.mxu0 %v623
    %632 = vmatpush.msra.mxu0 %v622
    %633 = vmatpush.msra.mxu0 %v621
    %634 = vmatpush.msra.mxu0 %v620
    %635 = vmatpush.msra.mxu0 %v619
    %636 = vmatpush.msra.mxu0 %v618
    %637 = vmatpush.msra.mxu0 %v617
    %638 = vmatpush.msra.mxu0 %v616
    %639 = vmatpush.msra.mxu0 %v615
    %640 = vmatpush.msra.mxu0 %v614
    %641 = vmatpush.msra.mxu0 %v613
    %642 = vmatpush.msra.mxu0 %v612
    %643 = vmatpush.msra.mxu0 %v611
    %644 = vmatpush.msra.mxu0 %v610
    %645 = vmatpush.msra.mxu0 %v609
    %646 = vmatmul.f32.gmra.mxu0 %v607
    %v647 = vpop.f32.mrf.mxu0
    %v648 = vadd.f32 %v628, %v647
    %649 = vdwg.mxu0
    %v650 = vmax.f32 %v648, 0.0
    %s651 = scalar_lea.vmem %s13, 16
    %v652 = vld [vmem:[%s651] sm:$0xff]
    %v653 = vld [vmem:[%s651 + $0x8] sm:$0xff]
    %s654 = scalar_lea.vmem %s14, 1
    %v655 = vld [vmem:[%s654] sm:$0x1]
    %v657 = vperm.slane %v655, 0
    %v660 = vsel %vm193, %v650, 0
    %662 = vmatpush.msra.mxu0 0.0
    %663 = vmatpush.msra.mxu0 0.0
    %664 = vmatpush.msra.mxu0 0.0
    %665 = vmatpush.msra.mxu0 0.0
    %666 = vmatpush.msra.mxu0 0.0
    %667 = vmatpush.msra.mxu0 0.0
    %668 = vmatpush.msra.mxu0 0.0
    %669 = vmatpush.msra.mxu0 0.0
    %670 = vmatpush.msra.mxu0 0.0
    %671 = vmatpush.msra.mxu0 0.0
    %672 = vmatpush.msra.mxu0 0.0
    %673 = vmatpush.msra.mxu0 0.0
    %674 = vmatpush.msra.mxu0 0.0
    %675 = vmatpush.msra.mxu0 0.0
    %676 = vmatpush.msra.mxu0 %v653
    %677 = vmatpush.msra.mxu0 %v652
    %678 = vmatmul.f32.gmra.mxu0 %v660
    %v679 = vpop.f32.mrf.mxu0
    %v680 = vadd.f32 %v657, %v679
    %681 = vdwg.mxu0
    %v682 = vmax.f32 %v680, 0.0
    %s683 = scalar_lea.vmem %s15, 24
    %v684 = vld [vmem:[%s683] sm:$0xff]
    %v685 = vld [vmem:[%s683 + $0x8] sm:$0xff]
    %v686 = vld [vmem:[%s683 + $0x10] sm:$0xff]
    %s687 = scalar_lea.vmem %s16, 1
    %v688 = vld [vmem:[%s687] sm:$0x1]
    %v690 = vperm.slane %v688, 0
    %v693 = vsel %vm154, %v682, 0
    %695 = vmatpush.msra.mxu0 0.0
    %696 = vmatpush.msra.mxu0 0.0
    %697 = vmatpush.msra.mxu0 0.0
    %698 = vmatpush.msra.mxu0 0.0
    %699 = vmatpush.msra.mxu0 0.0
    %700 = vmatpush.msra.mxu0 0.0
    %701 = vmatpush.msra.mxu0 0.0
    %702 = vmatpush.msra.mxu0 0.0
    %703 = vmatpush.msra.mxu0 0.0
    %704 = vmatpush.msra.mxu0 0.0
    %705 = vmatpush.msra.mxu0 0.0
    %706 = vmatpush.msra.mxu0 0.0
    %707 = vmatpush.msra.mxu0 0.0
    %708 = vmatpush.msra.mxu0 %v686
    %709 = vmatpush.msra.mxu0 %v685
    %710 = vmatpush.msra.mxu0 %v684
    %711 = vmatmul.f32.gmra.mxu0 %v693
    %v712 = vpop.f32.mrf.mxu0
    %v713 = vadd.f32 %v690, %v712
    %714 = vdwg.mxu0
    %v715 = vmax.f32 %v713, 0.0
    %s716 = scalar_lea.vmem %s17, 32
    %v717 = vld [vmem:[%s716] sm:$0xff]
    %v718 = vld [vmem:[%s716 + $0x8] sm:$0xff]
    %v719 = vld [vmem:[%s716 + $0x10] sm:$0xff]
    %v720 = vld [vmem:[%s716 + $0x18] sm:$0xff]
    %s721 = scalar_lea.vmem %s18, 1
    %v722 = vld [vmem:[%s721] sm:$0x1]
    %v724 = vperm.slane %v722, 0
    %v727 = vsel %vm122, %v715, 0
    %729 = vmatpush.msra.mxu0 0.0
    %730 = vmatpush.msra.mxu0 0.0
    %731 = vmatpush.msra.mxu0 0.0
    %732 = vmatpush.msra.mxu0 0.0
    %733 = vmatpush.msra.mxu0 0.0
    %734 = vmatpush.msra.mxu0 0.0
    %735 = vmatpush.msra.mxu0 0.0
    %736 = vmatpush.msra.mxu0 0.0
    %737 = vmatpush.msra.mxu0 0.0
    %738 = vmatpush.msra.mxu0 0.0
    %739 = vmatpush.msra.mxu0 0.0
    %740 = vmatpush.msra.mxu0 0.0
    %741 = vmatpush.msra.mxu0 %v720
    %742 = vmatpush.msra.mxu0 %v719
    %743 = vmatpush.msra.mxu0 %v718
    %744 = vmatpush.msra.mxu0 %v717
    %745 = vmatmul.f32.gmra.mxu0 %v727
    %v746 = vpop.f32.mrf.mxu0
    %v747 = vadd.f32 %v724, %v746
    %748 = vdwg.mxu0
    %s749 = scalar_lea.vmem %s21, 8
    %750 = vst [vmem:[%s749] sm:$0xff] %v747
    %s751 = scalar_lea.vmem %s22, 32
    %752 = vst [vmem:[%s751] sm:$0xff] %v559
    %753 = vst [vmem:[%s751 + $0x8] sm:$0xff] %v579
    %754 = vst [vmem:[%s751 + $0x10] sm:$0xff] %v599
    %755 = vst [vmem:[%s751 + $0x18] sm:$0xff] %v607
    %s756 = scalar_lea.vmem %s2, 8
    %v757 = vld [vmem:[%s756] sm:$0xff]
    %759 = vset.pattern.permute.xlu0 0
    %760 = vperm.xlu0 %759, %v757
    %v761 = vpop.permute.xlu0 %760
    %v763 = vmul.f32 %v559, %v761
    %v764 = vadd.f32 %v408, %v763
    %v765 = vadd.f32 %v409, %v757
    %s766 = scalar_lea.vmem %s0, 16
    %v767 = vld [vmem:[%s766] sm:$0xff]
    %s768 = scalar_lea.vmem %s3, 256
    %v769 = vld [vmem:[%s768] sm:$0xff]
    %v770 = vld [vmem:[%s768 + $0x8] sm:$0xff]
    %v771 = vld [vmem:[%s768 + $0x10] sm:$0xff]
    %v772 = vld [vmem:[%s768 + $0x18] sm:$0xff]
    %v773 = vld [vmem:[%s768 + $0x20] sm:$0xff]
    %v774 = vld [vmem:[%s768 + $0x28] sm:$0xff]
    %v775 = vld [vmem:[%s768 + $0x30] sm:$0xff]
    %v776 = vld [vmem:[%s768 + $0x38] sm:$0xff]
    %v777 = vld [vmem:[%s768 + $0x40] sm:$0xff]
    %v778 = vld [vmem:[%s768 + $0x48] sm:$0xff]
    %v779 = vld [vmem:[%s768 + $0x50] sm:$0xff]
    %v780 = vld [vmem:[%s768 + $0x58] sm:$0xff]
    %v781 = vld [vmem:[%s768 + $0x60] sm:$0xff]
    %v782 = vld [vmem:[%s768 + $0x68] sm:$0xff]
    %v783 = vld [vmem:[%s768 + $0x70] sm:$0xff]
    %v784 = vld [vmem:[%s768 + $0x78] sm:$0xff]
    %s785 = scalar_lea.vmem %s4, 2
    %v786 = vld [vmem:[%s785] sm:$0x1]
    %v788 = vperm.slane %v786, 0
    %790 = vmatpush.msra.mxu0 %v784
    %791 = vmatpush.msra.mxu0 %v783
    %792 = vmatpush.msra.mxu0 %v782
    %793 = vmatpush.msra.mxu0 %v781
    %794 = vmatpush.msra.mxu0 %v780
    %795 = vmatpush.msra.mxu0 %v779
    %796 = vmatpush.msra.mxu0 %v778
    %797 = vmatpush.msra.mxu0 %v777
    %798 = vmatpush.msra.mxu0 %v776
    %799 = vmatpush.msra.mxu0 %v775
    %800 = vmatpush.msra.mxu0 %v774
    %801 = vmatpush.msra.mxu0 %v773
    %802 = vmatpush.msra.mxu0 %v772
    %803 = vmatpush.msra.mxu0 %v771
    %804 = vmatpush.msra.mxu0 %v770
    %805 = vmatpush.msra.mxu0 %v769
    %806 = vmatmul.f32.gmra.mxu0 %v767
    %v807 = vpop.f32.mrf.mxu0
    %v808 = vadd.f32 %v788, %v807
    %809 = vdwg.mxu0
    %v810 = vmax.f32 %v808, 0.0
    %s811 = scalar_lea.vmem %s5, 64
    %v812 = vld [vmem:[%s811] sm:$0xff]
    %v813 = vld [vmem:[%s811 + $0x8] sm:$0xff]
    %v814 = vld [vmem:[%s811 + $0x10] sm:$0xff]
    %v815 = vld [vmem:[%s811 + $0x18] sm:$0xff]
    %s816 = scalar_lea.vmem %s6, 2
    %v817 = vld [vmem:[%s816] sm:$0x1]
    %v819 = vperm.slane %v817, 0
    %v822 = vsel %vm122, %v810, 0
    %824 = vmatpush.msra.mxu0 0.0
    %825 = vmatpush.msra.mxu0 0.0
    %826 = vmatpush.msra.mxu0 0.0
    %827 = vmatpush.msra.mxu0 0.0
    %828 = vmatpush.msra.mxu0 0.0
    %829 = vmatpush.msra.mxu0 0.0
    %830 = vmatpush.msra.mxu0 0.0
    %831 = vmatpush.msra.mxu0 0.0
    %832 = vmatpush.msra.mxu0 0.0
    %833 = vmatpush.msra.mxu0 0.0
    %834 = vmatpush.msra.mxu0 0.0
    %835 = vmatpush.msra.mxu0 0.0
    %836 = vmatpush.msra.mxu0 %v815
    %837 = vmatpush.msra.mxu0 %v814
    %838 = vmatpush.msra.mxu0 %v813
    %839 = vmatpush.msra.mxu0 %v812
    %840 = vmatmul.f32.gmra.mxu0 %v822
    %v841 = vpop.f32.mrf.mxu0
    %v842 = vadd.f32 %v819, %v841
    %843 = vdwg.mxu0
    %v844 = vmax.f32 %v842, 0.0
    %s845 = scalar_lea.vmem %s7, 48
    %v846 = vld [vmem:[%s845] sm:$0xff]
    %v847 = vld [vmem:[%s845 + $0x8] sm:$0xff]
    %v848 = vld [vmem:[%s845 + $0x10] sm:$0xff]
    %s849 = scalar_lea.vmem %s8, 2
    %v850 = vld [vmem:[%s849] sm:$0x1]
    %v852 = vperm.slane %v850, 0
    %v855 = vsel %vm154, %v844, 0
    %857 = vmatpush.msra.mxu0 0.0
    %858 = vmatpush.msra.mxu0 0.0
    %859 = vmatpush.msra.mxu0 0.0
    %860 = vmatpush.msra.mxu0 0.0
    %861 = vmatpush.msra.mxu0 0.0
    %862 = vmatpush.msra.mxu0 0.0
    %863 = vmatpush.msra.mxu0 0.0
    %864 = vmatpush.msra.mxu0 0.0
    %865 = vmatpush.msra.mxu0 0.0
    %866 = vmatpush.msra.mxu0 0.0
    %867 = vmatpush.msra.mxu0 0.0
    %868 = vmatpush.msra.mxu0 0.0
    %869 = vmatpush.msra.mxu0 0.0
    %870 = vmatpush.msra.mxu0 %v848
    %871 = vmatpush.msra.mxu0 %v847
    %872 = vmatpush.msra.mxu0 %v846
    %873 = vmatmul.f32.gmra.mxu0 %v855
    %v874 = vpop.f32.mrf.mxu0
    %v875 = vadd.f32 %v852, %v874
    %876 = vdwg.mxu0
    %v877 = vmax.f32 %v875, 0.0
    %s878 = scalar_lea.vmem %s9, 96
    %v879 = vld [vmem:[%s878] sm:$0xff]
    %v880 = vld [vmem:[%s878 + $0x8] sm:$0xff]
    %v881 = vld [vmem:[%s878 + $0x10] sm:$0xff]
    %v882 = vld [vmem:[%s878 + $0x18] sm:$0xff]
    %v883 = vld [vmem:[%s878 + $0x20] sm:$0xff]
    %v884 = vld [vmem:[%s878 + $0x28] sm:$0xff]
    %s885 = scalar_lea.vmem %s10, 6
    %v886 = vld [vmem:[%s885] sm:$0x7]
    %v888 = vperm.slane %v886, 0
    %v889 = vperm.slane %v886, 1
    %v890 = vperm.slane %v886, 2
    %v895 = vsel %vm193, %v877, 0
    %897 = vmatpush.msra.mxu0 0.0
    %898 = vmatpush.msra.mxu0 0.0
    %899 = vmatpush.msra.mxu0 0.0
    %900 = vmatpush.msra.mxu0 0.0
    %901 = vmatpush.msra.mxu0 0.0
    %902 = vmatpush.msra.mxu0 0.0
    %903 = vmatpush.msra.mxu0 0.0
    %904 = vmatpush.msra.mxu0 0.0
    %905 = vmatpush.msra.mxu0 0.0
    %906 = vmatpush.msra.mxu0 0.0
    %907 = vmatpush.msra.mxu0 0.0
    %908 = vmatpush.msra.mxu0 0.0
    %909 = vmatpush.msra.mxu0 0.0
    %910 = vmatpush.msra.mxu0 0.0
    %911 = vmatpush.msra.mxu0 %v882
    %912 = vmatpush.msra.mxu0 %v879
    %913 = vmatmul.f32.gmra.mxu0 %v895
    %v914 = vpop.f32.mrf.mxu0
    %v915 = vadd.f32 %v888, %v914
    %916 = vdwg.mxu0
    %917 = vmatpush.msra.mxu0 0.0
    %918 = vmatpush.msra.mxu0 0.0
    %919 = vmatpush.msra.mxu0 0.0
    %920 = vmatpush.msra.mxu0 0.0
    %921 = vmatpush.msra.mxu0 0.0
    %922 = vmatpush.msra.mxu0 0.0
    %923 = vmatpush.msra.mxu0 0.0
    %924 = vmatpush.msra.mxu0 0.0
    %925 = vmatpush.msra.mxu0 0.0
    %926 = vmatpush.msra.mxu0 0.0
    %927 = vmatpush.msra.mxu0 0.0
    %928 = vmatpush.msra.mxu0 0.0
    %929 = vmatpush.msra.mxu0 0.0
    %930 = vmatpush.msra.mxu0 0.0
    %931 = vmatpush.msra.mxu0 %v883
    %932 = vmatpush.msra.mxu0 %v880
    %933 = vmatmul.f32.gmra.mxu0 %v895
    %v934 = vpop.f32.mrf.mxu0
    %v935 = vadd.f32 %v889, %v934
    %936 = vdwg.mxu0
    %937 = vmatpush.msra.mxu0 0.0
    %938 = vmatpush.msra.mxu0 0.0
    %939 = vmatpush.msra.mxu0 0.0
    %940 = vmatpush.msra.mxu0 0.0
    %941 = vmatpush.msra.mxu0 0.0
    %942 = vmatpush.msra.mxu0 0.0
    %943 = vmatpush.msra.mxu0 0.0
    %944 = vmatpush.msra.mxu0 0.0
    %945 = vmatpush.msra.mxu0 0.0
    %946 = vmatpush.msra.mxu0 0.0
    %947 = vmatpush.msra.mxu0 0.0
    %948 = vmatpush.msra.mxu0 0.0
    %949 = vmatpush.msra.mxu0 0.0
    %950 = vmatpush.msra.mxu0 0.0
    %951 = vmatpush.msra.mxu0 %v884
    %952 = vmatpush.msra.mxu0 %v881
    %953 = vmatmul.f32.gmra.mxu0 %v895
    %v954 = vpop.f32.mrf.mxu0
    %v955 = vadd.f32 %v890, %v954
    %956 = vdwg.mxu0
    %v957 = vmul.f32 %v935, 0.5
    %v958 = vmul.f32 %v957, 1.442695
    %v959 = vpow.pop %v958
    %s960 = scalar_lea.vmem %s1, 16
    %v961 = vld [vmem:[%s960] sm:$0xff]
    %v962 = vmul.f32 %v959, %v961
    %v963 = vadd.f32 %v915, %v962
    %s964 = scalar_lea.vmem %s11, 256
    %v965 = vld [vmem:[%s964] sm:$0xff]
    %v966 = vld [vmem:[%s964 + $0x8] sm:$0xff]
    %v967 = vld [vmem:[%s964 + $0x10] sm:$0xff]
    %v968 = vld [vmem:[%s964 + $0x18] sm:$0xff]
    %v969 = vld [vmem:[%s964 + $0x20] sm:$0xff]
    %v970 = vld [vmem:[%s964 + $0x28] sm:$0xff]
    %v971 = vld [vmem:[%s964 + $0x30] sm:$0xff]
    %v972 = vld [vmem:[%s964 + $0x38] sm:$0xff]
    %v973 = vld [vmem:[%s964 + $0x40] sm:$0xff]
    %v974 = vld [vmem:[%s964 + $0x48] sm:$0xff]
    %v975 = vld [vmem:[%s964 + $0x50] sm:$0xff]
    %v976 = vld [vmem:[%s964 + $0x58] sm:$0xff]
    %v977 = vld [vmem:[%s964 + $0x60] sm:$0xff]
    %v978 = vld [vmem:[%s964 + $0x68] sm:$0xff]
    %v979 = vld [vmem:[%s964 + $0x70] sm:$0xff]
    %v980 = vld [vmem:[%s964 + $0x78] sm:$0xff]
    %s981 = scalar_lea.vmem %s12, 2
    %v982 = vld [vmem:[%s981] sm:$0x1]
    %v984 = vperm.slane %v982, 0
    %986 = vmatpush.msra.mxu0 %v980
    %987 = vmatpush.msra.mxu0 %v979
    %988 = vmatpush.msra.mxu0 %v978
    %989 = vmatpush.msra.mxu0 %v977
    %990 = vmatpush.msra.mxu0 %v976
    %991 = vmatpush.msra.mxu0 %v975
    %992 = vmatpush.msra.mxu0 %v974
    %993 = vmatpush.msra.mxu0 %v973
    %994 = vmatpush.msra.mxu0 %v972
    %995 = vmatpush.msra.mxu0 %v971
    %996 = vmatpush.msra.mxu0 %v970
    %997 = vmatpush.msra.mxu0 %v969
    %998 = vmatpush.msra.mxu0 %v968
    %999 = vmatpush.msra.mxu0 %v967
    %1000 = vmatpush.msra.mxu0 %v966
    %1001 = vmatpush.msra.mxu0 %v965
    %1002 = vmatmul.f32.gmra.mxu0 %v963
    %v1003 = vpop.f32.mrf.mxu0
    %v1004 = vadd.f32 %v984, %v1003
    %1005 = vdwg.mxu0
    %v1006 = vmax.f32 %v1004, 0.0
    %s1007 = scalar_lea.vmem %s13, 32
    %v1008 = vld [vmem:[%s1007] sm:$0xff]
    %v1009 = vld [vmem:[%s1007 + $0x8] sm:$0xff]
    %s1010 = scalar_lea.vmem %s14, 2
    %v1011 = vld [vmem:[%s1010] sm:$0x1]
    %v1013 = vperm.slane %v1011, 0
    %v1016 = vsel %vm193, %v1006, 0
    %1018 = vmatpush.msra.mxu0 0.0
    %1019 = vmatpush.msra.mxu0 0.0
    %1020 = vmatpush.msra.mxu0 0.0
    %1021 = vmatpush.msra.mxu0 0.0
    %1022 = vmatpush.msra.mxu0 0.0
    %1023 = vmatpush.msra.mxu0 0.0
    %1024 = vmatpush.msra.mxu0 0.0
    %1025 = vmatpush.msra.mxu0 0.0
    %1026 = vmatpush.msra.mxu0 0.0
    %1027 = vmatpush.msra.mxu0 0.0
    %1028 = vmatpush.msra.mxu0 0.0
    %1029 = vmatpush.msra.mxu0 0.0
    %1030 = vmatpush.msra.mxu0 0.0
    %1031 = vmatpush.msra.mxu0 0.0
    %1032 = vmatpush.msra.mxu0 %v1009
    %1033 = vmatpush.msra.mxu0 %v1008
    %1034 = vmatmul.f32.gmra.mxu0 %v1016
    %v1035 = vpop.f32.mrf.mxu0
    %v1036 = vadd.f32 %v1013, %v1035
    %1037 = vdwg.mxu0
    %v1038 = vmax.f32 %v1036, 0.0
    %s1039 = scalar_lea.vmem %s15, 48
    %v1040 = vld [vmem:[%s1039] sm:$0xff]
    %v1041 = vld [vmem:[%s1039 + $0x8] sm:$0xff]
    %v1042 = vld [vmem:[%s1039 + $0x10] sm:$0xff]
    %s1043 = scalar_lea.vmem %s16, 2
    %v1044 = vld [vmem:[%s1043] sm:$0x1]
    %v1046 = vperm.slane %v1044, 0
    %v1049 = vsel %vm154, %v1038, 0
    %1051 = vmatpush.msra.mxu0 0.0
    %1052 = vmatpush.msra.mxu0 0.0
    %1053 = vmatpush.msra.mxu0 0.0
    %1054 = vmatpush.msra.mxu0 0.0
    %1055 = vmatpush.msra.mxu0 0.0
    %1056 = vmatpush.msra.mxu0 0.0
    %1057 = vmatpush.msra.mxu0 0.0
    %1058 = vmatpush.msra.mxu0 0.0
    %1059 = vmatpush.msra.mxu0 0.0
    %1060 = vmatpush.msra.mxu0 0.0
    %1061 = vmatpush.msra.mxu0 0.0
    %1062 = vmatpush.msra.mxu0 0.0
    %1063 = vmatpush.msra.mxu0 0.0
    %1064 = vmatpush.msra.mxu0 %v1042
    %1065 = vmatpush.msra.mxu0 %v1041
    %1066 = vmatpush.msra.mxu0 %v1040
    %1067 = vmatmul.f32.gmra.mxu0 %v1049
    %v1068 = vpop.f32.mrf.mxu0
    %v1069 = vadd.f32 %v1046, %v1068
    %1070 = vdwg.mxu0
    %v1071 = vmax.f32 %v1069, 0.0
    %s1072 = scalar_lea.vmem %s17, 64
    %v1073 = vld [vmem:[%s1072] sm:$0xff]
    %v1074 = vld [vmem:[%s1072 + $0x8] sm:$0xff]
    %v1075 = vld [vmem:[%s1072 + $0x10] sm:$0xff]
    %v1076 = vld [vmem:[%s1072 + $0x18] sm:$0xff]
    %s1077 = scalar_lea.vmem %s18, 2
    %v1078 = vld [vmem:[%s1077] sm:$0x1]
    %v1080 = vperm.slane %v1078, 0
    %v1083 = vsel %vm122, %v1071, 0
    %1085 = vmatpush.msra.mxu0 0.0
    %1086 = vmatpush.msra.mxu0 0.0
    %1087 = vmatpush.msra.mxu0 0.0
    %1088 = vmatpush.msra.mxu0 0.0
    %1089 = vmatpush.msra.mxu0 0.0
    %1090 = vmatpush.msra.mxu0 0.0
    %1091 = vmatpush.msra.mxu0 0.0
    %1092 = vmatpush.msra.mxu0 0.0
    %1093 = vmatpush.msra.mxu0 0.0
    %1094 = vmatpush.msra.mxu0 0.0
    %1095 = vmatpush.msra.mxu0 0.0
    %1096 = vmatpush.msra.mxu0 0.0
    %1097 = vmatpush.msra.mxu0 %v1076
    %1098 = vmatpush.msra.mxu0 %v1075
    %1099 = vmatpush.msra.mxu0 %v1074
    %1100 = vmatpush.msra.mxu0 %v1073
    %1101 = vmatmul.f32.gmra.mxu0 %v1083
    %v1102 = vpop.f32.mrf.mxu0
    %v1103 = vadd.f32 %v1080, %v1102
    %1104 = vdwg.mxu0
    %s1105 = scalar_lea.vmem %s21, 16
    %1106 = vst [vmem:[%s1105] sm:$0xff] %v1103
    %s1107 = scalar_lea.vmem %s22, 64
    %1108 = vst [vmem:[%s1107] sm:$0xff] %v915
    %1109 = vst [vmem:[%s1107 + $0x8] sm:$0xff] %v935
    %1110 = vst [vmem:[%s1107 + $0x10] sm:$0xff] %v955
    %1111 = vst [vmem:[%s1107 + $0x18] sm:$0xff] %v963
    %s1112 = scalar_lea.vmem %s2, 16
    %v1113 = vld [vmem:[%s1112] sm:$0xff]
    %1115 = vset.pattern.permute.xlu0 0
    %1116 = vperm.xlu0 %1115, %v1113
    %v1117 = vpop.permute.xlu0 %1116
    %v1119 = vmul.f32 %v915, %v1117
    %v1120 = vadd.f32 %v764, %v1119
    %v1121 = vadd.f32 %v765, %v1113
    %v1122 = vmax.f32 %v1121, 1.0
    %1124 = vset.pattern.permute.xlu0 0
    %1125 = vperm.xlu0 %1124, %v1122
    %v1126 = vpop.permute.xlu0 %1125
    %v1128 = vrcp.pop %v1126
    %v1129 = vmul.f32 %v1126, %v1128
    %v1130 = vsub.f32 1.0, %v1129
    %v1131 = vmul.f32 %v1128, %v1130
    %v1132 = vadd.f32 %v1128, %v1131
    %vm1133 = vweird.f32 %v1126
    %vm1134 = vweird.f32 %v1128
    %vm1135 = vmor %vm1133, %vm1134
    %v1136 = vsel %vm1135, %v1128, %v1132
    %v1137 = vand.u32 2147483647, %v1126
    %vm1138 = vcmp.eq.f32.partialorder %v1137, 8.507059e+37
    %v1139 = vand.u32 %v1126, 2147483648
    %v1140 = vor.u32 1.1754944e-38, %v1139
    %v1141 = vsel %vm1138, %v1140, %v1136
    %v1142 = vmul.f32 %v1120, %v1141
    %v1143 = vld [vmem:[%s19] sm:$0xff]
    %v1144 = vld [vmem:[%s19 + $0x8] sm:$0xff]
    %v1145 = vld [vmem:[%s19 + $0x10] sm:$0xff]
    %v1146 = vld [vmem:[%s19 + $0x18] sm:$0xff]
    %v1147 = vld [vmem:[%s19 + $0x20] sm:$0xff]
    %v1148 = vld [vmem:[%s19 + $0x28] sm:$0xff]
    %v1149 = vld [vmem:[%s19 + $0x30] sm:$0xff]
    %v1150 = vld [vmem:[%s19 + $0x38] sm:$0xff]
    %v1151 = vld [vmem:[%s19 + $0x40] sm:$0xff]
    %v1152 = vld [vmem:[%s19 + $0x48] sm:$0xff]
    %v1153 = vld [vmem:[%s19 + $0x50] sm:$0xff]
    %v1154 = vld [vmem:[%s19 + $0x58] sm:$0xff]
    %v1155 = vld [vmem:[%s19 + $0x60] sm:$0xff]
    %v1156 = vld [vmem:[%s19 + $0x68] sm:$0xff]
    %v1157 = vld [vmem:[%s19 + $0x70] sm:$0xff]
    %v1158 = vld [vmem:[%s19 + $0x78] sm:$0xff]
    %v1159 = vld [vmem:[%s20] sm:$0x1]
    %v1161 = vperm.slane %v1159, 0
    %1163 = vmatpush.msra.mxu0 %v1158
    %1164 = vmatpush.msra.mxu0 %v1157
    %1165 = vmatpush.msra.mxu0 %v1156
    %1166 = vmatpush.msra.mxu0 %v1155
    %1167 = vmatpush.msra.mxu0 %v1154
    %1168 = vmatpush.msra.mxu0 %v1153
    %1169 = vmatpush.msra.mxu0 %v1152
    %1170 = vmatpush.msra.mxu0 %v1151
    %1171 = vmatpush.msra.mxu0 %v1150
    %1172 = vmatpush.msra.mxu0 %v1149
    %1173 = vmatpush.msra.mxu0 %v1148
    %1174 = vmatpush.msra.mxu0 %v1147
    %1175 = vmatpush.msra.mxu0 %v1146
    %1176 = vmatpush.msra.mxu0 %v1145
    %1177 = vmatpush.msra.mxu0 %v1144
    %1178 = vmatpush.msra.mxu0 %v1143
    %1179 = vmatmul.f32.gmra.mxu0 %v1142
    %v1180 = vpop.f32.mrf.mxu0
    %v1181 = vadd.f32 %v1161, %v1180
    %1182 = vdwg.mxu0
    %1183 = vst [vmem:[#allocation2] sm:$0xff] %v1181
    // Predicated region
    $region86: #{vmvae_classify_forward.1} parent=1 // pred_check
      _
    $region87: #{vmvae_classify_forward.1} parent=1 // pred_check_branch
      %1185 = sbr.rel (0) target = $region89
    $region88: #{vmvae_classify_forward.1} parent=1 // pred_region
      _
    $region89: #{vmvae_classify_forward.1} parent=1 // pred_fallthru
      _
    // Predicated region
    $region90: #{vmvae_classify_forward.1} parent=1 // pred_check
      _
    $region91: #{vmvae_classify_forward.1} parent=1 // pred_check_branch
      %1187 = sbr.rel (0) target = $region93
    $region92: #{vmvae_classify_forward.1} parent=1 // pred_region
      _
    $region93: #{vmvae_classify_forward.1} parent=1 // pred_fallthru
      _
    // Predicated region
    $region94: #{vmvae_classify_forward.1} parent=1 // pred_check
      _
    $region95: #{vmvae_classify_forward.1} parent=1 // pred_check_branch
      %1189 = sbr.rel (0) target = $region97
    $region96: #{vmvae_classify_forward.1} parent=1 // pred_region
      %1191 = vsyncadd [#allocation3], 0
      %s1193 = sshll.u32 [#allocation2], 4
      %s1194 = int_to_ptr.vmem [resolvable:$true] %s1193
      %s1195 = sshll.u32 %s23, 4
      %s1196 = int_to_ptr.hbm [resolvable:$true] %s1195
      %1198 = dma.vmem_to_hbm [thread:$0]  %s1194, 128, %s1196, [#allocation3]
    $region97: #{vmvae_classify_forward.1} parent=1 // pred_fallthru
      _
    // Predicated region
    $region98: #{vmvae_classify_forward.1} parent=1 // pred_check
      _
    $region99: #{vmvae_classify_forward.1} parent=1 // pred_check_branch
      %1200 = sbr.rel (0) target = $region101
    $region100: #{vmvae_classify_forward.1} parent=1 // pred_region
      _
    $region101: #{vmvae_classify_forward.1} parent=1 // pred_fallthru
      _
    // Predicated region
    $region102: #{vmvae_classify_forward.1} parent=1 // pred_check
      _
    $region103: #{vmvae_classify_forward.1} parent=1 // pred_check_branch
      %1202 = sbr.rel (0) target = $region105
    $region104: #{vmvae_classify_forward.1} parent=1 // pred_region
      _
    $region105: #{vmvae_classify_forward.1} parent=1 // pred_fallthru
      _
    // Predicated region
    $region106: #{vmvae_classify_forward.1} parent=1 // pred_check
      _
    $region107: #{vmvae_classify_forward.1} parent=1 // pred_check_branch
      %1204 = sbr.rel (0) target = $region109
    $region108: #{vmvae_classify_forward.1} parent=1 // pred_region
      %1206 = dma.done [#allocation3], 128
    $region109: #{vmvae_classify_forward.1} parent=1 // pred_fallthru
      _
    %1207 = vsyncpa [#allocation3], 1

</llo_original>
